<compile_context>
chip_gen: v7x
topology: tpu7x:2x2x1
jax: 0.10.0
libtpu: 0.0.40
codegen_flags: <defaults>
</compile_context>

<pallas_src>
import functools

import jax
import jax.numpy as jnp
import numpy as np
from jax.experimental import pallas as pl
from jax.experimental.pallas import tpu as pltpu


# --------------------------------------------------------------------------
# Fused Block kernel: one grid step == B_TILE images
# --------------------------------------------------------------------------

def _block_kernel(xcol_ref, xc_ref, w1_ref, b1m_ref, w2_ref,
                  sew1_ref, sew2_ref, w3_ref, wsc_ref, bias_ref,
                  o_ref, *, n_pix, proj):
    f32, bf16 = jnp.float32, jnp.bfloat16
    M = xcol_ref.shape[0]            # B_TILE * Ho * Wo   (static)
    B = M // n_pix                   # images per grid step (static)
    K2 = w2_ref.shape[0]             # 9 * w_b
    w_b = w2_ref.shape[1]
    w_se = sew1_ref.shape[1]
    w_out = w3_ref.shape[1]

    # stacked small biases: row0=b2, row1=se_b1, row2=se_b2, row3=b3(+bsc)
    b2 = bias_ref[pl.ds(0, 1), pl.ds(0, w_b)]
    seb1 = bias_ref[pl.ds(1, 1), pl.ds(0, w_se)]
    seb2 = bias_ref[pl.ds(2, 1), pl.ds(0, w_b)]
    b3 = bias_ref[pl.ds(3, 1), pl.ds(0, w_out)]

    # ---- conv1 (+bn1, scale folded) on all 9 conv2 tap windows at once ------
    # (M, 9*Cin) @ blockdiag(W1, 9) -> lane-dense (M, 9*w_b) im2col slab of h1.
    z1 = jnp.dot(xcol_ref[...], w1_ref[...], preferred_element_type=f32)
    # per-(pixel, tap) bias; padded tap positions carry -1e30 so the relu pins
    # them to exactly 0, reproducing conv2's zero padding.
    z1 = z1.reshape(B, n_pix, K2) + b1m_ref[...]
    h1 = jnp.maximum(z1, 0.0).reshape(M, K2).astype(bf16)

    # ---- conv2 (grouped 3x3, stride) == ONE K=9*w_b matmul, + bn2 + relu ----
    h2 = jnp.maximum(
        jnp.dot(h1, w2_ref[...], preferred_element_type=f32) + b2, 0.0)

    # ---- per-image SE gate, conv3+bn3, shortcut, add + relu (2-D slabs) -----
    for b in range(B):
        lo = b * n_pix
        hb = h2[lo:lo + n_pix, :]                                   # (n_pix, w_b)
        pooled = jnp.mean(hb, axis=0, keepdims=True).astype(bf16)   # (1, w_b)
        g = jnp.dot(pooled, sew1_ref[...], preferred_element_type=f32) + seb1
        g = jnp.maximum(g, 0.0).astype(bf16)
        g = jnp.dot(g, sew2_ref[...], preferred_element_type=f32) + seb2
        gate = 1.0 / (1.0 + jnp.exp(-g))                            # (1, w_b)
        hg = (hb * gate).astype(bf16)

        y = jnp.dot(hg, w3_ref[...], preferred_element_type=f32)    # conv3
        xcb = xc_ref[pl.ds(lo, n_pix), :]                            # x[:, ::s, ::s]
        if proj:
            y = y + jnp.dot(xcb, wsc_ref[...], preferred_element_type=f32)
        else:
            y = y + xcb.astype(f32)       # identity shortcut: no matmul
        y = jnp.maximum(y + b3, 0.0)
        o_ref[pl.ds(lo, n_pix), :] = y.astype(o_ref.dtype)


# --------------------------------------------------------------------------
# Wrapper: NCHW in / NCHW out (PyTorch interface)
# --------------------------------------------------------------------------

def _pick_batch_tile(n):
    # largest divisor <= 8 that still leaves >= 2 grid steps (megacore);
    # fall back to a single step only when unavoidable.
    cands = [d for d in range(1, min(n, 8) + 1) if n % d == 0]
    two_step = [d for d in cands if n // d >= 2]
    return max(two_step) if two_step else max(cands)


def block_forward(x_nchw, p):
    s = int(p["stride"])
    proj = bool(p["proj"])
    N, Cin, H, W = x_nchw.shape
    Ho = (H - 1) // s + 1
    Wo = (W - 1) // s + 1
    n_pix = Ho * Wo
    w_out = p["w3"].shape[1]
    assert n_pix % 16 == 0, "kernel assumes Ho*Wo is sublane-tile aligned"
    assert p["b1m"].shape[0] == n_pix, "params were built for different H, W"

    # Wrapper-side im2col (tap-major channels) -> lane-dense conv2 K dimension.
    # TODO(synk): for a full NHWC network this gather should be fused into the
    # producer instead of being a separate XLA pass over the input.
    xb = jnp.transpose(x_nchw, (0, 2, 3, 1)).astype(jnp.bfloat16)    # NHWC bf16
    xp = jnp.pad(xb, ((0, 0), (1, 1), (1, 1), (0, 0)))
    cols = [xp[:, kh:kh + (Ho - 1) * s + 1:s, kw:kw + (Wo - 1) * s + 1:s, :]
            for kh in range(3) for kw in range(3)]
    x_col = jnp.concatenate(cols, axis=-1).reshape(N * n_pix, 9 * Cin)
    x_ctr = cols[4].reshape(N * n_pix, Cin)     # center tap == shortcut input

    bt = _pick_batch_tile(N)
    grid = (N // bt,)
    blk_m = bt * n_pix

    def const_spec(a):
        z = (0,) * a.ndim
        return pl.BlockSpec(a.shape, lambda i, _z=z: _z)

    weights = (p["w1bd"], p["b1m"], p["w2"],
               p["se_w1"], p["se_w2"], p["w3"], p["wsc"], p["bias4"])

    kernel = functools.partial(_block_kernel, n_pix=n_pix, proj=proj)

    out = pl.pallas_call(
        kernel,
        out_shape=jax.ShapeDtypeStruct((N * n_pix, w_out), jnp.bfloat16),
        grid=grid,
        in_specs=[pl.BlockSpec((blk_m, 9 * Cin), lambda i: (i, 0)),
                  pl.BlockSpec((blk_m, Cin), lambda i: (i, 0))]
                 + [const_spec(a) for a in weights],
        out_specs=pl.BlockSpec((blk_m, w_out), lambda i: (i, 0)),
        compiler_params=pltpu.CompilerParams(
            dimension_semantics=("parallel",)),
    )(x_col, x_ctr, *weights)

    out = out.reshape(N, Ho, Wo, w_out).astype(jnp.float32)
    return jnp.transpose(out, (0, 3, 1, 2))


# --------------------------------------------------------------------------
# Deterministic parameter construction (synthetic; BN folded eval-mode)
# --------------------------------------------------------------------------

def init_block(key, w_in, w_out, stride, group_width, bottleneck_ratio,
               se_ratio, H, W):
    w_b = int(round(w_out * bottleneck_ratio))
    num_groups = w_b // group_width
    gw = w_b // num_groups
    w_se = int(round(w_in * se_ratio))
    eps = 1e-5
    s = stride
    Ho = (H - 1) // s + 1
    Wo = (W - 1) // s + 1
    n_pix = Ho * Wo
    bf16, f32 = jnp.bfloat16, jnp.float32
    ks = jax.random.split(key, 12)

    def q(w):   # snap to the bf16 grid; kernel & reference share these values
        return w.astype(bf16).astype(f32)

    def bn_fold(k, c):
        k1, k2, k3, k4 = jax.random.split(k, 4)
        gamma = jax.random.uniform(k1, (c,), minval=0.8, maxval=1.2)
        beta = 0.1 * jax.random.normal(k2, (c,))
        mean = 0.1 * jax.random.normal(k3, (c,))
        var = jax.random.uniform(k4, (c,), minval=0.5, maxval=1.5)
        sc = gamma / jnp.sqrt(var + eps)
        return sc.astype(f32), (beta - mean * sc).astype(f32)

    w1_oihw = q(0.1 * jax.random.normal(ks[0], (w_b, w_in, 1, 1), f32))
    w2_g = q(0.1 * jax.random.normal(ks[1], (w_b, gw, 3, 3), f32))   # grouped
    w3_oihw = q(0.1 * jax.random.normal(ks[2], (w_out, w_b, 1, 1), f32))
    se1_w = q(0.1 * jax.random.normal(ks[4], (w_se, w_b, 1, 1), f32))
    se1_b = 0.1 * jax.random.normal(ks[5], (w_se,), f32)
    se2_w = q(0.1 * jax.random.normal(ks[6], (w_b, w_se, 1, 1), f32))
    se2_b = 0.1 * jax.random.normal(ks[7], (w_b,), f32)

    s1, b1 = bn_fold(ks[8], w_b)
    s2, b2 = bn_fold(ks[9], w_b)
    s3, b3 = bn_fold(ks[10], w_out)

    proj = (stride != 1 or w_in != w_out)
    if proj:
        wsc_oihw = q(0.1 * jax.random.normal(ks[3], (w_out, w_in, 1, 1), f32))
        ssc, bsc = bn_fold(ks[11], w_out)
    else:
        wsc_oihw = None
        ssc, bsc = jnp.ones((w_out,), f32), jnp.zeros((w_out,), f32)

    # ---- kernel-ready operands (BN scales folded into the matmul weights) ---
    w1_mat = jnp.transpose(w1_oihw[:, :, 0, 0]) * s1[None, :]         # (Cin,w_b)
    w1bd = jnp.kron(jnp.eye(9, dtype=f32), w1_mat).astype(bf16)       # (9Cin,9w_b)

    # grouped weight -> dense block-diagonal -> (9*w_b, w_b), tap-major rows
    w2_full = jnp.zeros((w_b, w_b, 3, 3), f32)
    for g in range(num_groups):
        w2_full = w2_full.at[g * gw:(g + 1) * gw, g * gw:(g + 1) * gw].set(
            w2_g[g * gw:(g + 1) * gw])
    w2_flat = (jnp.transpose(w2_full, (2, 3, 1, 0)).reshape(9 * w_b, w_b)
               * s2[None, :]).astype(bf16)

    # per-(pixel, tap) conv1 bias; -1e30 at zero-padded tap positions so relu
    # pins them to exactly 0 (== conv2's zero padding of h1).
    ii = np.arange(Ho) * s
    jj = np.arange(Wo) * s
    valid = np.zeros((n_pix, 9), dtype=bool)
    for kh in range(3):
        for kw in range(3):
            rok = (ii + kh >= 1) & (ii + kh <= H)
            cok = (jj + kw >= 1) & (jj + kw <= W)
            valid[:, kh * 3 + kw] = (rok[:, None] & cok[None, :]).reshape(-1)
    valid = jnp.asarray(np.repeat(valid, w_b, axis=1))                # (n_pix,9w_b)
    b1m = jnp.where(valid, jnp.tile(b1.reshape(1, w_b), (1, 9)),
                    -1e30).astype(f32)

    w3_mat = (jnp.transpose(w3_oihw[:, :, 0, 0]) * s3[None, :]).astype(bf16)
    if proj:
        wsc_mat = (jnp.transpose(wsc_oihw[:, :, 0, 0]) * ssc[None, :]).astype(bf16)
    else:
        wsc_mat = jnp.zeros((w_in, w_out), bf16)      # unused by the kernel

    # stacked small biases: row0=b2, row1=se_b1, row2=se_b2, row3=b3(+bsc)
    cmax = max(w_b, w_out, w_se)

    def rowpad(v):
        return jnp.pad(v.reshape(1, -1), ((0, 0), (0, cmax - v.shape[0])))

    bias4 = jnp.concatenate(
        [rowpad(b2), rowpad(se1_b), rowpad(se2_b), rowpad(b3 + bsc)], axis=0)

    params = dict(
        stride=stride, proj=proj,
        w1bd=w1bd, b1m=b1m, w2=w2_flat,
        se_w1=jnp.transpose(se1_w[:, :, 0, 0]).astype(bf16),          # (w_b,w_se)
        se_w2=jnp.transpose(se2_w[:, :, 0, 0]).astype(bf16),          # (w_se,w_b)
        w3=w3_mat, wsc=wsc_mat, bias4=bias4,
    )
    raw = dict(w1=w1_oihw, w2_grouped=w2_g, w3=w3_oihw, wsc=wsc_oihw,
               se1_w=se1_w, se1_b=se1_b, se2_w=se2_w, se2_b=se2_b,
               s1=s1, b1=b1, s2=s2, b2=b2, s3=s3, b3=b3, ssc=ssc, bsc=bsc,
               num_groups=num_groups, proj=proj, stride=stride)
    return params, raw


# Pure-JAX reference (lax.conv, NCHW, f32) used only as a correctness check.
def ref_forward(x_nchw, raw):
    stride = raw["stride"]

    def conv(x, w, *, stride=1, padding=0, groups=1):
        return jax.lax.conv_general_dilated(
            x, w, (stride, stride), [(padding, padding)] * 2,
            feature_group_count=groups,
            dimension_numbers=("NCHW", "OIHW", "NCHW"))

    def bn(x, s, b):
        return x * s.reshape(1, -1, 1, 1) + b.reshape(1, -1, 1, 1)

    h = jax.nn.relu(bn(conv(x_nchw, raw["w1"]), raw["s1"], raw["b1"]))
    h = jax.nn.relu(bn(conv(h, raw["w2_grouped"], stride=stride, padding=1,
                            groups=raw["num_groups"]), raw["s2"], raw["b2"]))
    pooled = jnp.mean(h, axis=(2, 3), keepdims=True)
    g1 = jax.nn.relu(conv(pooled, raw["se1_w"]) + raw["se1_b"].reshape(1, -1, 1, 1))
    gate = jax.nn.sigmoid(conv(g1, raw["se2_w"]) + raw["se2_b"].reshape(1, -1, 1, 1))
    h = h * gate
    h = bn(conv(h, raw["w3"]), raw["s3"], raw["b3"])
    if raw["proj"]:
        sc = bn(conv(x_nchw, raw["wsc"], stride=stride), raw["ssc"], raw["bsc"])
    else:
        sc = x_nchw
    return jax.nn.relu(h + sc)


if __name__ == "__main__":
    # Small RegNet-style Block config (projection shortcut, SE enabled).
    w_in, w_out, stride = 16, 32, 2
    group_width, bottleneck_ratio, se_ratio = 8, 1.0, 0.5
    N, H, W = 2, 16, 16

    key = jax.random.PRNGKey(0)
    kx, kp = jax.random.split(key)
    x = jax.random.normal(kx, (N, w_in, H, W), jnp.float32)     # NCHW like PyTorch
    # Snap x to the bf16 grid so the f32 reference consumes exactly the values
    # the bf16 kernel sees.
    x = x.astype(jnp.bfloat16).astype(jnp.float32)

    params, raw = init_block(kp, w_in, w_out, stride, group_width,
                             bottleneck_ratio, se_ratio, H, W)

    fwd = jax.jit(lambda xx: block_forward(xx, params))
    out = jax.block_until_ready(fwd(x))
    ref = jax.block_until_ready(ref_forward(x, raw))

    assert out.shape == (N, w_out, H // stride, W // stride), out.shape
    # Tolerance covers bf16 rounding of intermediate activations, BN-folded
    # weights and the bf16 output store (identical input/weight quantization
    # on both paths).
    np.testing.assert_allclose(np.asarray(out), np.asarray(ref),
                               atol=2.5e-2, rtol=2.5e-2)
    print("KERNEL_OK")
</pallas_src>

<mosaic_0001>
module attributes {stable_mosaic.version = 11 : i64} {
  func.func @_block_kernel(%arg0: i32, %arg1: memref<64x144xbf16, #tpu.memory_space<vmem>>, %arg2: memref<64x16xbf16, #tpu.memory_space<vmem>>, %arg3: memref<144x288xbf16, #tpu.memory_space<vmem>>, %arg4: memref<64x288xf32, #tpu.memory_space<vmem>>, %arg5: memref<288x32xbf16, #tpu.memory_space<vmem>>, %arg6: memref<32x8xbf16, #tpu.memory_space<vmem>>, %arg7: memref<8x32xbf16, #tpu.memory_space<vmem>>, %arg8: memref<32x32xbf16, #tpu.memory_space<vmem>>, %arg9: memref<16x32xbf16, #tpu.memory_space<vmem>>, %arg10: memref<4x32xf32, #tpu.memory_space<vmem>>, %arg11: memref<64x32xbf16, #tpu.memory_space<vmem>>) attributes {dimension_semantics = [#tpu.dimension_semantics<parallel>], iteration_bounds = array<i64: 2>, scalar_prefetch = 0 : i64, scratch_operands = 0 : i64, tpu.core_type = #tpu.core_type<tc>, window_params = [{transform_indices = @transform_0, window_bounds = array<i64: 64, 144>}, {transform_indices = @transform_1, window_bounds = array<i64: 64, 16>}, {pipeline_mode = #tpu.pipeline_mode<synchronous>, transform_indices = @transform_2, window_bounds = array<i64: 144, 288>}, {pipeline_mode = #tpu.pipeline_mode<synchronous>, transform_indices = @transform_3, window_bounds = array<i64: 64, 288>}, {pipeline_mode = #tpu.pipeline_mode<synchronous>, transform_indices = @transform_4, window_bounds = array<i64: 288, 32>}, {pipeline_mode = #tpu.pipeline_mode<synchronous>, transform_indices = @transform_5, window_bounds = array<i64: 32, 8>}, {pipeline_mode = #tpu.pipeline_mode<synchronous>, transform_indices = @transform_6, window_bounds = array<i64: 8, 32>}, {pipeline_mode = #tpu.pipeline_mode<synchronous>, transform_indices = @transform_7, window_bounds = array<i64: 32, 32>}, {pipeline_mode = #tpu.pipeline_mode<synchronous>, transform_indices = @transform_8, window_bounds = array<i64: 16, 32>}, {pipeline_mode = #tpu.pipeline_mode<synchronous>, transform_indices = @transform_9, window_bounds = array<i64: 4, 32>}, {transform_indices = @transform_10, window_bounds = array<i64: 64, 32>}]} {
    %c0 = arith.constant 0 : index
    %c0_0 = arith.constant 0 : index
    %0 = vector.load %arg10[%c0, %c0_0] : memref<4x32xf32, #tpu.memory_space<vmem>>, vector<1x32xf32>
    %c1 = arith.constant 1 : index
    %c0_1 = arith.constant 0 : index
    %1 = vector.load %arg10[%c1, %c0_1] : memref<4x32xf32, #tpu.memory_space<vmem>>, vector<1x8xf32>
    %c2 = arith.constant 2 : index
    %c0_2 = arith.constant 0 : index
    %2 = vector.load %arg10[%c2, %c0_2] : memref<4x32xf32, #tpu.memory_space<vmem>>, vector<1x32xf32>
    %c3 = arith.constant 3 : index
    %c0_3 = arith.constant 0 : index
    %3 = vector.load %arg10[%c3, %c0_3] : memref<4x32xf32, #tpu.memory_space<vmem>>, vector<1x32xf32>
    %c0_4 = arith.constant 0 : index
    %c0_5 = arith.constant 0 : index
    %4 = vector.load %arg1[%c0_4, %c0_5] : memref<64x144xbf16, #tpu.memory_space<vmem>>, vector<64x144xbf16>
    %c0_6 = arith.constant 0 : index
    %c0_7 = arith.constant 0 : index
    %5 = vector.load %arg3[%c0_6, %c0_7] : memref<144x288xbf16, #tpu.memory_space<vmem>>, vector<144x288xbf16>
    %cst = arith.constant dense<0.000000e+00> : vector<64x288xf32>
    %6 = tpu.matmul %4, %5, %cst {dimension_numbers = #tpu.dot_dimension_numbers<[1], [0], [0], [1], [0, 0, 1, 1], [], []>} : vector<64x144xbf16>, vector<144x288xbf16>, vector<64x288xf32> -> vector<64x288xf32>
    %7 = vector.shape_cast %6 : vector<64x288xf32> to vector<1x64x288xf32>
    %c0_8 = arith.constant 0 : index
    %c0_9 = arith.constant 0 : index
    %8 = vector.load %arg4[%c0_8, %c0_9] : memref<64x288xf32, #tpu.memory_space<vmem>>, vector<64x288xf32>
    %9 = vector.shape_cast %8 : vector<64x288xf32> to vector<1x64x288xf32>
    %10 = arith.addf %7, %9 : vector<1x64x288xf32>
    %cst_10 = arith.constant 0.000000e+00 : f32
    %11 = vector.broadcast %cst_10 : f32 to vector<1x64x288xf32>
    %12 = arith.maximumf %10, %11 : vector<1x64x288xf32>
    %13 = vector.shape_cast %12 : vector<1x64x288xf32> to vector<64x288xf32>
    %14 = arith.truncf %13 : vector<64x288xf32> to vector<64x288xbf16>
    %c0_11 = arith.constant 0 : index
    %c0_12 = arith.constant 0 : index
    %15 = vector.load %arg5[%c0_11, %c0_12] : memref<288x32xbf16, #tpu.memory_space<vmem>>, vector<288x32xbf16>
    %cst_13 = arith.constant dense<0.000000e+00> : vector<64x32xf32>
    %16 = tpu.matmul %14, %15, %cst_13 {dimension_numbers = #tpu.dot_dimension_numbers<[1], [0], [0], [1], [0, 0, 1, 1], [], []>} : vector<64x288xbf16>, vector<288x32xbf16>, vector<64x32xf32> -> vector<64x32xf32>
    %17 = vector.broadcast %0 : vector<1x32xf32> to vector<64x32xf32>
    %18 = arith.addf %16, %17 : vector<64x32xf32>
    %cst_14 = arith.constant 0.000000e+00 : f32
    %19 = vector.broadcast %cst_14 : f32 to vector<64x32xf32>
    %20 = arith.maximumf %18, %19 : vector<64x32xf32>
    %cst_15 = arith.constant dense<0.000000e+00> : vector<32xf32>
    %21 = vector.multi_reduction <add>, %20, %cst_15 [0] : vector<64x32xf32> to vector<32xf32>
    %22 = vector.shape_cast %21 : vector<32xf32> to vector<1x32xf32>
    %cst_16 = arith.constant 6.400000e+01 : f32
    %23 = vector.broadcast %cst_16 : f32 to vector<1x32xf32>
    %24 = arith.divf %22, %23 : vector<1x32xf32>
    %25 = arith.truncf %24 : vector<1x32xf32> to vector<1x32xbf16>
    %c0_17 = arith.constant 0 : index
    %c0_18 = arith.constant 0 : index
    %26 = vector.load %arg6[%c0_17, %c0_18] : memref<32x8xbf16, #tpu.memory_space<vmem>>, vector<32x8xbf16>
    %cst_19 = arith.constant dense<0.000000e+00> : vector<1x8xf32>
    %27 = tpu.matmul %25, %26, %cst_19 {dimension_numbers = #tpu.dot_dimension_numbers<[1], [0], [0], [1], [0, 0, 1, 1], [], []>} : vector<1x32xbf16>, vector<32x8xbf16>, vector<1x8xf32> -> vector<1x8xf32>
    %28 = arith.addf %27, %1 : vector<1x8xf32>
    %cst_20 = arith.constant 0.000000e+00 : f32
    %29 = vector.broadcast %cst_20 : f32 to vector<1x8xf32>
    %30 = arith.maximumf %28, %29 : vector<1x8xf32>
    %31 = arith.truncf %30 : vector<1x8xf32> to vector<1x8xbf16>
    %c0_21 = arith.constant 0 : index
    %c0_22 = arith.constant 0 : index
    %32 = vector.load %arg7[%c0_21, %c0_22] : memref<8x32xbf16, #tpu.memory_space<vmem>>, vector<8x32xbf16>
    %cst_23 = arith.constant dense<0.000000e+00> : vector<1x32xf32>
    %33 = tpu.matmul %31, %32, %cst_23 {dimension_numbers = #tpu.dot_dimension_numbers<[1], [0], [0], [1], [0, 0, 1, 1], [], []>} : vector<1x8xbf16>, vector<8x32xbf16>, vector<1x32xf32> -> vector<1x32xf32>
    %34 = arith.addf %33, %2 : vector<1x32xf32>
    %cst_24 = arith.constant 0.000000e+00 : f32
    %35 = vector.broadcast %cst_24 : f32 to vector<1x32xf32>
    %36 = arith.subf %35, %34 : vector<1x32xf32>
    %37 = math.exp %36 : vector<1x32xf32>
    %cst_25 = arith.constant 1.000000e+00 : f32
    %38 = vector.broadcast %cst_25 : f32 to vector<1x32xf32>
    %39 = arith.addf %38, %37 : vector<1x32xf32>
    %cst_26 = arith.constant 1.000000e+00 : f32
    %40 = vector.broadcast %cst_26 : f32 to vector<1x32xf32>
    %41 = arith.divf %40, %39 : vector<1x32xf32>
    %42 = vector.broadcast %41 : vector<1x32xf32> to vector<64x32xf32>
    %43 = arith.mulf %20, %42 : vector<64x32xf32>
    %44 = arith.truncf %43 : vector<64x32xf32> to vector<64x32xbf16>
    %c0_27 = arith.constant 0 : index
    %c0_28 = arith.constant 0 : index
    %45 = vector.load %arg8[%c0_27, %c0_28] : memref<32x32xbf16, #tpu.memory_space<vmem>>, vector<32x32xbf16>
    %cst_29 = arith.constant dense<0.000000e+00> : vector<64x32xf32>
    %46 = tpu.matmul %44, %45, %cst_29 {dimension_numbers = #tpu.dot_dimension_numbers<[1], [0], [0], [1], [0, 0, 1, 1], [], []>} : vector<64x32xbf16>, vector<32x32xbf16>, vector<64x32xf32> -> vector<64x32xf32>
    %c0_30 = arith.constant 0 : index
    %c0_31 = arith.constant 0 : index
    %47 = vector.load %arg2[%c0_30, %c0_31] : memref<64x16xbf16, #tpu.memory_space<vmem>>, vector<64x16xbf16>
    %c0_32 = arith.constant 0 : index
    %c0_33 = arith.constant 0 : index
    %48 = vector.load %arg9[%c0_32, %c0_33] : memref<16x32xbf16, #tpu.memory_space<vmem>>, vector<16x32xbf16>
    %cst_34 = arith.constant dense<0.000000e+00> : vector<64x32xf32>
    %49 = tpu.matmul %47, %48, %cst_34 {dimension_numbers = #tpu.dot_dimension_numbers<[1], [0], [0], [1], [0, 0, 1, 1], [], []>} : vector<64x16xbf16>, vector<16x32xbf16>, vector<64x32xf32> -> vector<64x32xf32>
    %50 = arith.addf %46, %49 : vector<64x32xf32>
    %51 = vector.broadcast %3 : vector<1x32xf32> to vector<64x32xf32>
    %52 = arith.addf %50, %51 : vector<64x32xf32>
    %cst_35 = arith.constant 0.000000e+00 : f32
    %53 = vector.broadcast %cst_35 : f32 to vector<64x32xf32>
    %54 = arith.maximumf %52, %53 : vector<64x32xf32>
    %55 = arith.truncf %54 : vector<64x32xf32> to vector<64x32xbf16>
    %c0_36 = arith.constant 0 : index
    %c0_37 = arith.constant 0 : index
    %56 = vector.load %arg11[%c0_36, %c0_37] : memref<64x32xbf16, #tpu.memory_space<vmem>>, vector<64x32xbf16>
    tpu.vector_store %arg11[%c0_36, %c0_37], %55 {strides = array<i32>} : memref<64x32xbf16, #tpu.memory_space<vmem>>, vector<64x32xbf16>,
    return
  }
  func.func @transform_0(%arg0: i32) -> (i32, i32) {
    %c0_i32 = arith.constant 0 : i32
    %c0_i32_0 = arith.constant 0 : i32
    return %arg0, %c0_i32 : i32, i32
  }
  func.func @transform_1(%arg0: i32) -> (i32, i32) {
    %c0_i32 = arith.constant 0 : i32
    %c0_i32_0 = arith.constant 0 : i32
    return %arg0, %c0_i32 : i32, i32
  }
  func.func @transform_2(%arg0: i32) -> (i32, i32) {
    %c0_i32 = arith.constant 0 : i32
    %c0_i32_0 = arith.constant 0 : i32
    %c0_i32_1 = arith.constant 0 : i32
    return %c0_i32, %c0_i32_0 : i32, i32
  }
  func.func @transform_3(%arg0: i32) -> (i32, i32) {
    %c0_i32 = arith.constant 0 : i32
    %c0_i32_0 = arith.constant 0 : i32
    %c0_i32_1 = arith.constant 0 : i32
    return %c0_i32, %c0_i32_0 : i32, i32
  }
  func.func @transform_4(%arg0: i32) -> (i32, i32) {
    %c0_i32 = arith.constant 0 : i32
    %c0_i32_0 = arith.constant 0 : i32
    %c0_i32_1 = arith.constant 0 : i32
    return %c0_i32, %c0_i32_0 : i32, i32
  }
  func.func @transform_5(%arg0: i32) -> (i32, i32) {
    %c0_i32 = arith.constant 0 : i32
    %c0_i32_0 = arith.constant 0 : i32
    %c0_i32_1 = arith.constant 0 : i32
    return %c0_i32, %c0_i32_0 : i32, i32
  }
  func.func @transform_6(%arg0: i32) -> (i32, i32) {
    %c0_i32 = arith.constant 0 : i32
    %c0_i32_0 = arith.constant 0 : i32
    %c0_i32_1 = arith.constant 0 : i32
    return %c0_i32, %c0_i32_0 : i32, i32
  }
  func.func @transform_7(%arg0: i32) -> (i32, i32) {
    %c0_i32 = arith.constant 0 : i32
    %c0_i32_0 = arith.constant 0 : i32
    %c0_i32_1 = arith.constant 0 : i32
    return %c0_i32, %c0_i32_0 : i32, i32
  }
  func.func @transform_8(%arg0: i32) -> (i32, i32) {
    %c0_i32 = arith.constant 0 : i32
    %c0_i32_0 = arith.constant 0 : i32
    %c0_i32_1 = arith.constant 0 : i32
    return %c0_i32, %c0_i32_0 : i32, i32
  }
  func.func @transform_9(%arg0: i32) -> (i32, i32) {
    %c0_i32 = arith.constant 0 : i32
    %c0_i32_0 = arith.constant 0 : i32
    %c0_i32_1 = arith.constant 0 : i32
    return %c0_i32, %c0_i32_0 : i32, i32
  }
  func.func @transform_10(%arg0: i32) -> (i32, i32) {
    %c0_i32 = arith.constant 0 : i32
    %c0_i32_0 = arith.constant 0 : i32
    return %arg0, %c0_i32 : i32, i32
  }
}

</mosaic_0001>

<llo_original>
// kernel: _lambda_.1
$region0: #{_lambda_.1}
  #allocation0 [shape = 'u32[]', space=smem, size = 0x4, offset = 0x4, fixed_abs, tag = 'smem constant byte address 0x4 - core index']
  #allocation1 [shape = 'u32[144,128]{1,0:T(1,128)}', space=vmem, size = 0x12000, scoped, tag = 'internal scratch']
  %s0 = inlined_call_operand.vmem [shape: bf16[128,144], index: 0, kind: input, shape index: {}]
  %s1 = inlined_call_operand.vmem [shape: bf16[128,16], index: 1, kind: input, shape index: {}]
  %s2 = inlined_call_operand.vmem [shape: bf16[144,288], index: 2, kind: input, shape index: {}]
  %s3 = inlined_call_operand.vmem [shape: f32[64,288], index: 3, kind: input, shape index: {}]
  %s4 = inlined_call_operand.vmem [shape: bf16[288,32], index: 4, kind: input, shape index: {}]
  %s5 = inlined_call_operand.vmem [shape: bf16[32,8], index: 5, kind: input, shape index: {}]
  %s6 = inlined_call_operand.vmem [shape: bf16[8,32], index: 6, kind: input, shape index: {}]
  %s7 = inlined_call_operand.vmem [shape: bf16[32,32], index: 7, kind: input, shape index: {}]
  %s8 = inlined_call_operand.vmem [shape: bf16[16,32], index: 8, kind: input, shape index: {}]
  %s9 = inlined_call_operand.vmem [shape: f32[4,32], index: 9, kind: input, shape index: {}]
  %s10 = inlined_call_operand.vmem [shape: bf16[128,32], index: 10, kind: output, shape index: {}]
  %s11 = sld [smem:[#allocation0]]
  $region73: #{_lambda_.1} parent=0
    _
  %s13 = ssub.s32 1, %s11
  %s14 = scalar_select 0, %s13, %s11
  loop: start=0, step=1, limit=4
  $region2: #{_lambda_.1} parent=0 // loop_pre_header
    _
  $region3: #{_lambda_.1} parent=0 // loop_header
    %s16 = sphi 0, %s20
    %p17 = scmp.ge.s32.totalorder %s16, 4
    %s26 = sphi 0, %s28
    %s29 = sphi 0, %s26
    %s30 = sphi 0, %s29
    %s46 = sphi 0, %s30
    %s52 = sphi 0, %s54
    %s55 = sphi 0, %s52
    %s56 = sphi 0, %s55
    %s72 = sphi 0, %s56
    %s76 = sphi 0, %s76
    %s78 = sphi 0, %s76
    %s79 = sphi 0, %s78
    %s93 = sphi 0, %s79
    %s97 = sphi 0, %s97
    %s99 = sphi 0, %s97
    %s100 = sphi 0, %s99
    %s114 = sphi 0, %s100
    %s118 = sphi 0, %s118
    %s120 = sphi 0, %s118
    %s121 = sphi 0, %s120
    %s135 = sphi 0, %s121
    %s139 = sphi 0, %s139
    %s141 = sphi 0, %s139
    %s142 = sphi 0, %s141
    %s156 = sphi 0, %s142
    %s160 = sphi 0, %s160
    %s162 = sphi 0, %s160
    %s163 = sphi 0, %s162
    %s177 = sphi 0, %s163
    %s181 = sphi 0, %s181
    %s183 = sphi 0, %s181
    %s184 = sphi 0, %s183
    %s198 = sphi 0, %s184
    %s202 = sphi 0, %s202
    %s204 = sphi 0, %s202
    %s205 = sphi 0, %s204
    %s219 = sphi 0, %s205
    %s223 = sphi 0, %s223
    %s225 = sphi 0, %s223
    %s226 = sphi 0, %s225
    %s240 = sphi 0, %s226
    %s246 = sphi 0, %s248
    %s249 = sphi 0, %s246
    %s250 = sphi 0, %s249
    %s266 = sphi 0, %s250
  $region4: #{_lambda_.1} parent=0 // loop_header_branch
    %19 = sbr.rel (%p17) target = $region8
  $region5: #{_lambda_.1} parent=0 // loop_body
    %s21 = ssub.s32 %s16, 1
    %s22 = ssub.s32 %s16, 2
    %s23 = sadd.s32 %s16, 1
    %s24 = ssub.s32 %s16, %s23
    %p25 = scmp.eq.s32.totalorder %s24, 0
    %s27 = sadd.s32 %s26, 1
    %s28 = scalar_select %p25, %s26, %s27
    %p31 = pneg %p25
    %p32 = scmp.eq.s32.totalorder %s16, 1
    %p33 = por %p31, %p32
    %p34 = scmp.ne.s32.totalorder %s26, %s29
    %p35 = scmp.eq.s32.totalorder %s16, 0
    %p36 = por %p34, %p35
    %p37 = scmp.ne.s32.totalorder %s26, %s29
    %p38 = scmp.eq.s32.totalorder %s21, 1
    %p39 = por %p37, %p38
    %p40 = scmp.ne.s32.totalorder %s29, %s30
    %p41 = scmp.eq.s32.totalorder %s21, 0
    %p42 = por %p40, %p41
    %p43 = scmp.ne.s32.totalorder %s29, %s30
    %p44 = scmp.eq.s32.totalorder %s22, 1
    %p45 = por %p43, %p44
    %p47 = scmp.ne.s32.totalorder %s30, %s46
    %p48 = scmp.eq.s32.totalorder %s22, 0
    %p49 = por %p47, %p48
    %s50 = ssub.s32 %s16, %s23
    %p51 = scmp.eq.s32.totalorder %s50, 0
    %s53 = sadd.s32 %s52, 1
    %s54 = scalar_select %p51, %s52, %s53
    %p57 = pneg %p51
    %p58 = scmp.eq.s32.totalorder %s16, 1
    %p59 = por %p57, %p58
    %p60 = scmp.ne.s32.totalorder %s52, %s55
    %p61 = scmp.eq.s32.totalorder %s16, 0
    %p62 = por %p60, %p61
    %p63 = scmp.ne.s32.totalorder %s52, %s55
    %p64 = scmp.eq.s32.totalorder %s21, 1
    %p65 = por %p63, %p64
    %p66 = scmp.ne.s32.totalorder %s55, %s56
    %p67 = scmp.eq.s32.totalorder %s21, 0
    %p68 = por %p66, %p67
    %p69 = scmp.ne.s32.totalorder %s55, %s56
    %p70 = scmp.eq.s32.totalorder %s22, 1
    %p71 = por %p69, %p70
    %p73 = scmp.ne.s32.totalorder %s56, %s72
    %p74 = scmp.eq.s32.totalorder %s22, 0
    %p75 = por %p73, %p74
    %s77 = sadd.s32 %s76, 1
    %p80 = scmp.eq.s32.totalorder %s16, 1
    %p81 = scmp.ne.s32.totalorder %s76, %s78
    %p82 = scmp.eq.s32.totalorder %s16, 0
    %p83 = por %p81, %p82
    %p84 = scmp.ne.s32.totalorder %s76, %s78
    %p85 = scmp.eq.s32.totalorder %s21, 1
    %p86 = por %p84, %p85
    %p87 = scmp.ne.s32.totalorder %s78, %s79
    %p88 = scmp.eq.s32.totalorder %s21, 0
    %p89 = por %p87, %p88
    %p90 = scmp.ne.s32.totalorder %s78, %s79
    %p91 = scmp.eq.s32.totalorder %s22, 1
    %p92 = por %p90, %p91
    %p94 = scmp.ne.s32.totalorder %s79, %s93
    %p95 = scmp.eq.s32.totalorder %s22, 0
    %p96 = por %p94, %p95
    %s98 = sadd.s32 %s97, 1
    %p101 = scmp.eq.s32.totalorder %s16, 1
    %p102 = scmp.ne.s32.totalorder %s97, %s99
    %p103 = scmp.eq.s32.totalorder %s16, 0
    %p104 = por %p102, %p103
    %p105 = scmp.ne.s32.totalorder %s97, %s99
    %p106 = scmp.eq.s32.totalorder %s21, 1
    %p107 = por %p105, %p106
    %p108 = scmp.ne.s32.totalorder %s99, %s100
    %p109 = scmp.eq.s32.totalorder %s21, 0
    %p110 = por %p108, %p109
    %p111 = scmp.ne.s32.totalorder %s99, %s100
    %p112 = scmp.eq.s32.totalorder %s22, 1
    %p113 = por %p111, %p112
    %p115 = scmp.ne.s32.totalorder %s100, %s114
    %p116 = scmp.eq.s32.totalorder %s22, 0
    %p117 = por %p115, %p116
    %s119 = sadd.s32 %s118, 1
    %p122 = scmp.eq.s32.totalorder %s16, 1
    %p123 = scmp.ne.s32.totalorder %s118, %s120
    %p124 = scmp.eq.s32.totalorder %s16, 0
    %p125 = por %p123, %p124
    %p126 = scmp.ne.s32.totalorder %s118, %s120
    %p127 = scmp.eq.s32.totalorder %s21, 1
    %p128 = por %p126, %p127
    %p129 = scmp.ne.s32.totalorder %s120, %s121
    %p130 = scmp.eq.s32.totalorder %s21, 0
    %p131 = por %p129, %p130
    %p132 = scmp.ne.s32.totalorder %s120, %s121
    %p133 = scmp.eq.s32.totalorder %s22, 1
    %p134 = por %p132, %p133
    %p136 = scmp.ne.s32.totalorder %s121, %s135
    %p137 = scmp.eq.s32.totalorder %s22, 0
    %p138 = por %p136, %p137
    %s140 = sadd.s32 %s139, 1
    %p143 = scmp.eq.s32.totalorder %s16, 1
    %p144 = scmp.ne.s32.totalorder %s139, %s141
    %p145 = scmp.eq.s32.totalorder %s16, 0
    %p146 = por %p144, %p145
    %p147 = scmp.ne.s32.totalorder %s139, %s141
    %p148 = scmp.eq.s32.totalorder %s21, 1
    %p149 = por %p147, %p148
    %p150 = scmp.ne.s32.totalorder %s141, %s142
    %p151 = scmp.eq.s32.totalorder %s21, 0
    %p152 = por %p150, %p151
    %p153 = scmp.ne.s32.totalorder %s141, %s142
    %p154 = scmp.eq.s32.totalorder %s22, 1
    %p155 = por %p153, %p154
    %p157 = scmp.ne.s32.totalorder %s142, %s156
    %p158 = scmp.eq.s32.totalorder %s22, 0
    %p159 = por %p157, %p158
    %s161 = sadd.s32 %s160, 1
    %p164 = scmp.eq.s32.totalorder %s16, 1
    %p165 = scmp.ne.s32.totalorder %s160, %s162
    %p166 = scmp.eq.s32.totalorder %s16, 0
    %p167 = por %p165, %p166
    %p168 = scmp.ne.s32.totalorder %s160, %s162
    %p169 = scmp.eq.s32.totalorder %s21, 1
    %p170 = por %p168, %p169
    %p171 = scmp.ne.s32.totalorder %s162, %s163
    %p172 = scmp.eq.s32.totalorder %s21, 0
    %p173 = por %p171, %p172
    %p174 = scmp.ne.s32.totalorder %s162, %s163
    %p175 = scmp.eq.s32.totalorder %s22, 1
    %p176 = por %p174, %p175
    %p178 = scmp.ne.s32.totalorder %s163, %s177
    %p179 = scmp.eq.s32.totalorder %s22, 0
    %p180 = por %p178, %p179
    %s182 = sadd.s32 %s181, 1
    %p185 = scmp.eq.s32.totalorder %s16, 1
    %p186 = scmp.ne.s32.totalorder %s181, %s183
    %p187 = scmp.eq.s32.totalorder %s16, 0
    %p188 = por %p186, %p187
    %p189 = scmp.ne.s32.totalorder %s181, %s183
    %p190 = scmp.eq.s32.totalorder %s21, 1
    %p191 = por %p189, %p190
    %p192 = scmp.ne.s32.totalorder %s183, %s184
    %p193 = scmp.eq.s32.totalorder %s21, 0
    %p194 = por %p192, %p193
    %p195 = scmp.ne.s32.totalorder %s183, %s184
    %p196 = scmp.eq.s32.totalorder %s22, 1
    %p197 = por %p195, %p196
    %p199 = scmp.ne.s32.totalorder %s184, %s198
    %p200 = scmp.eq.s32.totalorder %s22, 0
    %p201 = por %p199, %p200
    %s203 = sadd.s32 %s202, 1
    %p206 = scmp.eq.s32.totalorder %s16, 1
    %p207 = scmp.ne.s32.totalorder %s202, %s204
    %p208 = scmp.eq.s32.totalorder %s16, 0
    %p209 = por %p207, %p208
    %p210 = scmp.ne.s32.totalorder %s202, %s204
    %p211 = scmp.eq.s32.totalorder %s21, 1
    %p212 = por %p210, %p211
    %p213 = scmp.ne.s32.totalorder %s204, %s205
    %p214 = scmp.eq.s32.totalorder %s21, 0
    %p215 = por %p213, %p214
    %p216 = scmp.ne.s32.totalorder %s204, %s205
    %p217 = scmp.eq.s32.totalorder %s22, 1
    %p218 = por %p216, %p217
    %p220 = scmp.ne.s32.totalorder %s205, %s219
    %p221 = scmp.eq.s32.totalorder %s22, 0
    %p222 = por %p220, %p221
    %s224 = sadd.s32 %s223, 1
    %p227 = scmp.eq.s32.totalorder %s16, 1
    %p228 = scmp.ne.s32.totalorder %s223, %s225
    %p229 = scmp.eq.s32.totalorder %s16, 0
    %p230 = por %p228, %p229
    %p231 = scmp.ne.s32.totalorder %s223, %s225
    %p232 = scmp.eq.s32.totalorder %s21, 1
    %p233 = por %p231, %p232
    %p234 = scmp.ne.s32.totalorder %s225, %s226
    %p235 = scmp.eq.s32.totalorder %s21, 0
    %p236 = por %p234, %p235
    %p237 = scmp.ne.s32.totalorder %s225, %s226
    %p238 = scmp.eq.s32.totalorder %s22, 1
    %p239 = por %p237, %p238
    %p241 = scmp.ne.s32.totalorder %s226, %s240
    %p242 = scmp.eq.s32.totalorder %s22, 0
    %p243 = por %p241, %p242
    %s244 = ssub.s32 %s16, %s23
    %p245 = scmp.eq.s32.totalorder %s244, 0
    %s247 = sadd.s32 %s246, 1
    %s248 = scalar_select %p245, %s246, %s247
    %p251 = pneg %p245
    %p252 = scmp.eq.s32.totalorder %s16, 1
    %p253 = por %p251, %p252
    %p254 = scmp.ne.s32.totalorder %s246, %s249
    %p255 = scmp.eq.s32.totalorder %s16, 0
    %p256 = por %p254, %p255
    %p257 = scmp.ne.s32.totalorder %s246, %s249
    %p258 = scmp.eq.s32.totalorder %s21, 1
    %p259 = por %p257, %p258
    %p260 = scmp.ne.s32.totalorder %s249, %s250
    %p261 = scmp.eq.s32.totalorder %s21, 0
    %p262 = por %p260, %p261
    %p263 = scmp.ne.s32.totalorder %s249, %s250
    %p264 = scmp.eq.s32.totalorder %s22, 1
    %p265 = por %p263, %p264
    %p267 = scmp.ne.s32.totalorder %s250, %s266
    %p268 = scmp.eq.s32.totalorder %s22, 0
    %p269 = por %p267, %p268
    %p270 = scmp.le.s32.totalorder 1, %s16
    %p271 = scmp.lt.s32.totalorder %s16, 3
    %p272 = pnand %p270, %p271
    %p273 = pneg %p272
    // Predicated region
    $region9: #{_lambda_.1} parent=5 // pred_check
      _
    $region10: #{_lambda_.1} parent=5 // pred_check_branch
      %275 = sbr.rel (%p272) target = $region12
    $region11: #{_lambda_.1} parent=5 // pred_region
      %s276 = ssub.s32 %s16, 1
      // Predicated region
      $region13: #{_lambda_.1} parent=11 // pred_check
        %p277 = pneg %p89
      $region14: #{_lambda_.1} parent=11 // pred_check_branch
        %279 = sbr.rel (%p277) target = $region16
      $region15: #{_lambda_.1} parent=11 // pred_region
        _
      $region16: #{_lambda_.1} parent=11 // pred_fallthru
        _
      // Predicated region
      $region17: #{_lambda_.1} parent=11 // pred_check
        %p280 = pneg %p110
      $region18: #{_lambda_.1} parent=11 // pred_check_branch
        %282 = sbr.rel (%p280) target = $region20
      $region19: #{_lambda_.1} parent=11 // pred_region
        _
      $region20: #{_lambda_.1} parent=11 // pred_fallthru
        _
      // Predicated region
      $region21: #{_lambda_.1} parent=11 // pred_check
        %p283 = pneg %p131
      $region22: #{_lambda_.1} parent=11 // pred_check_branch
        %285 = sbr.rel (%p283) target = $region24
      $region23: #{_lambda_.1} parent=11 // pred_region
        _
      $region24: #{_lambda_.1} parent=11 // pred_fallthru
        _
      // Predicated region
      $region25: #{_lambda_.1} parent=11 // pred_check
        %p286 = pneg %p152
      $region26: #{_lambda_.1} parent=11 // pred_check_branch
        %288 = sbr.rel (%p286) target = $region28
      $region27: #{_lambda_.1} parent=11 // pred_region
        _
      $region28: #{_lambda_.1} parent=11 // pred_fallthru
        _
      // Predicated region
      $region29: #{_lambda_.1} parent=11 // pred_check
        %p289 = pneg %p173
      $region30: #{_lambda_.1} parent=11 // pred_check_branch
        %291 = sbr.rel (%p289) target = $region32
      $region31: #{_lambda_.1} parent=11 // pred_region
        _
      $region32: #{_lambda_.1} parent=11 // pred_fallthru
        _
      // Predicated region
      $region33: #{_lambda_.1} parent=11 // pred_check
        %p292 = pneg %p194
      $region34: #{_lambda_.1} parent=11 // pred_check_branch
        %294 = sbr.rel (%p292) target = $region36
      $region35: #{_lambda_.1} parent=11 // pred_region
        _
      $region36: #{_lambda_.1} parent=11 // pred_fallthru
        _
      // Predicated region
      $region37: #{_lambda_.1} parent=11 // pred_check
        %p295 = pneg %p215
      $region38: #{_lambda_.1} parent=11 // pred_check_branch
        %297 = sbr.rel (%p295) target = $region40
      $region39: #{_lambda_.1} parent=11 // pred_region
        _
      $region40: #{_lambda_.1} parent=11 // pred_fallthru
        _
      // Predicated region
      $region41: #{_lambda_.1} parent=11 // pred_check
        %p298 = pneg %p236
      $region42: #{_lambda_.1} parent=11 // pred_check_branch
        %300 = sbr.rel (%p298) target = $region44
      $region43: #{_lambda_.1} parent=11 // pred_region
        _
      $region44: #{_lambda_.1} parent=11 // pred_fallthru
        _
    $region12: #{_lambda_.1} parent=5 // pred_fallthru
      _
    %p301 = scmp.lt.s32.totalorder %s16, 2
    // Predicated region
    $region45: #{_lambda_.1} parent=5 // pred_check
      %p302 = pneg %p301
    $region46: #{_lambda_.1} parent=5 // pred_check_branch
      %304 = sbr.rel (%p302) target = $region48
    $region47: #{_lambda_.1} parent=5 // pred_region
      // Predicated region
      $region49: #{_lambda_.1} parent=47 // pred_check
        %p305 = pneg %p36
      $region50: #{_lambda_.1} parent=47 // pred_check_branch
        %307 = sbr.rel (%p305) target = $region52
      $region51: #{_lambda_.1} parent=47 // pred_region
        %s308 = smul.u32 8, %s16
        %p309 = scmp.lt.s32.totalorder %s308, 15
        %s310 = scalar_select %p309, %s308, 15
        %s311 = smul.addr %s310, 2
        %s312 = smul.addr %s311, 4
        %s313 = scalar_lea.vmem %s0, %s312
        %s314 = smul.u32 8, %s16
      $region52: #{_lambda_.1} parent=47 // pred_fallthru
        _
      // Predicated region
      $region53: #{_lambda_.1} parent=47 // pred_check
        %p315 = pneg %p62
      $region54: #{_lambda_.1} parent=47 // pred_check_branch
        %317 = sbr.rel (%p315) target = $region56
      $region55: #{_lambda_.1} parent=47 // pred_region
        %s318 = smul.u32 8, %s16
        %p319 = scmp.lt.s32.totalorder %s318, 15
        %s320 = scalar_select %p319, %s318, 15
        %s321 = smul.addr %s320, 4
        %s322 = scalar_lea.vmem %s1, %s321
        %s323 = smul.u32 8, %s16
      $region56: #{_lambda_.1} parent=47 // pred_fallthru
        _
    $region48: #{_lambda_.1} parent=5 // pred_fallthru
      _
    %p324 = scmp.le.s32.totalorder 1, %s16
    %p325 = scmp.lt.s32.totalorder %s16, 3
    %p326 = pnand %p324, %p325
    %p327 = pneg %p326
    // Predicated region
    $region57: #{_lambda_.1} parent=5 // pred_check
      _
    $region58: #{_lambda_.1} parent=5 // pred_check_branch
      %329 = sbr.rel (%p326) target = $region60
    $region59: #{_lambda_.1} parent=5 // pred_region
      %s330 = ssub.s32 %s16, 1
      %s331 = smul.u32 8, %s21
      %p332 = scmp.lt.s32.totalorder %s331, 15
      %s333 = scalar_select %p332, %s331, 15
      %s334 = smul.addr %s333, 2
      %s335 = smul.addr %s334, 4
      %s336 = scalar_lea.vmem %s0, %s335
      %p337 = pneg %p42
      %p338 = pneg %p39
      %s339 = smul.u32 8, %s21
      %p340 = scmp.lt.s32.totalorder %s339, 15
      %s341 = scalar_select %p340, %s339, 15
      %s342 = smul.addr %s341, 4
      %s343 = scalar_lea.vmem %s1, %s342
      %p344 = pneg %p68
      %p345 = pneg %p65
      %p346 = pneg %p89
      %p347 = pneg %p86
      %p348 = pneg %p110
      %p349 = pneg %p107
      %p350 = pneg %p131
      %p351 = pneg %p128
      %p352 = pneg %p152
      %p353 = pneg %p149
      %p354 = pneg %p173
      %p355 = pneg %p170
      %p356 = pneg %p194
      %p357 = pneg %p191
      %p358 = pneg %p215
      %p359 = pneg %p212
      %p360 = pneg %p236
      %p361 = pneg %p233
      %p362 = pneg %p262
      %p363 = pneg %p259
      %s364 = smul.u32 8, %s21
      %p365 = scmp.lt.s32.totalorder %s364, 15
      %s366 = scalar_select %p365, %s364, 15
      %s367 = smul.addr %s366, 4
      %s368 = scalar_lea.vmem %s10, %s367
      %s369 = smul.u32 8, %s21
      %p370 = scmp.lt.s32.totalorder %s369, 15
      %s371 = scalar_select %p370, %s369, 15
      %s372 = smul.addr %s371, 2
      %s373 = smul.addr %s372, 4
      %s374 = scalar_lea.vmem %s0, %s373
      %s375 = smul.u32 8, %s21
      %s376 = smul.u32 8, %s21
      %p377 = scmp.lt.s32.totalorder %s376, 15
      %s378 = scalar_select %p377, %s376, 15
      %s379 = smul.addr %s378, 4
      %s380 = scalar_lea.vmem %s1, %s379
      %s381 = smul.u32 8, %s21
      %s382 = smul.u32 8, %s21
      %p383 = scmp.lt.s32.totalorder %s382, 15
      %s384 = scalar_select %p383, %s382, 15
      %s385 = smul.addr %s384, 4
      %s386 = scalar_lea.vmem %s10, %s385
      %s387 = smul.u32 8, %s21
      %v389 = vld [vmem:[%s9] sm:$0x1]
      %v390 = vld [vmem:[%s9 + $0x1] sm:$0x1]
      %v391 = vld [vmem:[%s9 + $0x2] sm:$0x1]
      %v392 = vld [vmem:[%s9 + $0x3] sm:$0x1]
      %v393 = vld [vmem:[%s374] sm:$0xff]
      %v394 = vld [vmem:[%s374 + $0x8] sm:$0xff]
      %v395 = vld [vmem:[%s374 + $0x10] sm:$0xff]
      %v396 = vld [vmem:[%s374 + $0x18] sm:$0xff]
      %v397 = vld [vmem:[%s374 + $0x20] sm:$0xff]
      %v398 = vld [vmem:[%s374 + $0x28] sm:$0xff]
      %v399 = vld [vmem:[%s374 + $0x30] sm:$0xff]
      %v400 = vld [vmem:[%s374 + $0x38] sm:$0xff]
      %v401 = vld [vmem:[%s2] sm:$0xff]
      %v402 = vld [vmem:[%s2 + $0x8] sm:$0xf]
      %v403 = vld [vmem:[%s2 + $0xc] sm:$0xff]
      %v404 = vld [vmem:[%s2 + $0x14] sm:$0xf]
      %v405 = vld [vmem:[%s2 + $0x18] sm:$0xff]
      %v406 = vld [vmem:[%s2 + $0x20] sm:$0xf]
      %v407 = vld [vmem:[%s2 + $0x24] sm:$0xff]
      %v408 = vld [vmem:[%s2 + $0x2c] sm:$0xf]
      %v409 = vld [vmem:[%s2 + $0x30] sm:$0xff]
      %v410 = vld [vmem:[%s2 + $0x38] sm:$0xf]
      %v411 = vld [vmem:[%s2 + $0x3c] sm:$0xff]
      %v412 = vld [vmem:[%s2 + $0x44] sm:$0xf]
      %v413 = vld [vmem:[%s2 + $0x48] sm:$0xff]
      %v414 = vld [vmem:[%s2 + $0x50] sm:$0xf]
      %v415 = vld [vmem:[%s2 + $0x54] sm:$0xff]
      %v416 = vld [vmem:[%s2 + $0x5c] sm:$0xf]
      %v417 = vld [vmem:[%s2 + $0x60] sm:$0xff]
      %v418 = vld [vmem:[%s2 + $0x68] sm:$0xf]
      %v419 = vld [vmem:[%s2 + $0x6c] sm:$0xff]
      %v420 = vld [vmem:[%s2 + $0x74] sm:$0xf]
      %v421 = vld [vmem:[%s2 + $0x78] sm:$0xff]
      %v422 = vld [vmem:[%s2 + $0x80] sm:$0xf]
      %v423 = vld [vmem:[%s2 + $0x84] sm:$0xff]
      %v424 = vld [vmem:[%s2 + $0x8c] sm:$0xf]
      %v425 = vld [vmem:[%s2 + $0x90] sm:$0xff]
      %v426 = vld [vmem:[%s2 + $0x98] sm:$0xf]
      %v427 = vld [vmem:[%s2 + $0x9c] sm:$0xff]
      %v428 = vld [vmem:[%s2 + $0xa4] sm:$0xf]
      %v429 = vld [vmem:[%s2 + $0xa8] sm:$0xff]
      %v430 = vld [vmem:[%s2 + $0xb0] sm:$0xf]
      %v431 = vld [vmem:[%s2 + $0xb4] sm:$0xff]
      %v432 = vld [vmem:[%s2 + $0xbc] sm:$0xf]
      %v433 = vld [vmem:[%s2 + $0xc0] sm:$0xff]
      %v434 = vld [vmem:[%s2 + $0xc8] sm:$0xf]
      %v435 = vld [vmem:[%s2 + $0xcc] sm:$0xff]
      %v436 = vld [vmem:[%s2 + $0xd4] sm:$0xf]
      %v445 = vunpack.c.l.b16 %v393
      %v446 = vunpack.c.h.b16 %v393
      %v447 = vunpack.c.l.b16 %v394
      %v448 = vunpack.c.h.b16 %v394
      %v449 = vunpack.c.l.b16 %v395
      %v450 = vunpack.c.h.b16 %v395
      %v451 = vunpack.c.l.b16 %v396
      %v452 = vunpack.c.h.b16 %v396
      %v453 = vunpack.c.l.b16 %v397
      %v454 = vunpack.c.h.b16 %v397
      %v455 = vunpack.c.l.b16 %v398
      %v456 = vunpack.c.h.b16 %v398
      %v457 = vunpack.c.l.b16 %v399
      %v458 = vunpack.c.h.b16 %v399
      %v459 = vunpack.c.l.b16 %v400
      %v460 = vunpack.c.h.b16 %v400
      %v461 = vpack.c.b16 %v447, %v445
      %v462 = vpack.c.b16 %v448, %v446
      %v463 = vpack.c.b16 %v451, %v449
      %v464 = vpack.c.b16 %v452, %v450
      %v465 = vpack.c.b16 %v455, %v453
      %v466 = vpack.c.b16 %v456, %v454
      %v467 = vpack.c.b16 %v459, %v457
      %v468 = vpack.c.b16 %v460, %v458
      %v509 = vunpack.c.l.b16 %v401
      %v510 = vunpack.c.h.b16 %v401
      %v511 = vunpack.c.l.b16 %v402
      %v512 = vunpack.c.l.b16 %v403
      %v513 = vunpack.c.h.b16 %v403
      %v514 = vunpack.c.l.b16 %v404
      %v515 = vunpack.c.l.b16 %v405
      %v516 = vunpack.c.h.b16 %v405
      %v517 = vunpack.c.l.b16 %v406
      %v518 = vunpack.c.l.b16 %v407
      %v519 = vunpack.c.h.b16 %v407
      %v520 = vunpack.c.l.b16 %v408
      %v521 = vunpack.c.l.b16 %v409
      %v522 = vunpack.c.h.b16 %v409
      %v523 = vunpack.c.l.b16 %v410
      %v524 = vunpack.c.l.b16 %v411
      %v525 = vunpack.c.h.b16 %v411
      %v526 = vunpack.c.l.b16 %v412
      %v527 = vunpack.c.l.b16 %v413
      %v528 = vunpack.c.h.b16 %v413
      %v529 = vunpack.c.l.b16 %v414
      %v530 = vunpack.c.l.b16 %v415
      %v531 = vunpack.c.h.b16 %v415
      %v532 = vunpack.c.l.b16 %v416
      %v533 = vunpack.c.l.b16 %v417
      %v534 = vunpack.c.h.b16 %v417
      %v535 = vunpack.c.l.b16 %v418
      %v536 = vunpack.c.l.b16 %v419
      %v537 = vunpack.c.h.b16 %v419
      %v538 = vunpack.c.l.b16 %v420
      %v539 = vunpack.c.l.b16 %v421
      %v540 = vunpack.c.h.b16 %v421
      %v541 = vunpack.c.l.b16 %v422
      %v542 = vunpack.c.l.b16 %v423
      %v543 = vunpack.c.h.b16 %v423
      %v544 = vunpack.c.l.b16 %v424
      %v545 = vunpack.c.l.b16 %v425
      %v546 = vunpack.c.h.b16 %v425
      %v547 = vunpack.c.l.b16 %v426
      %v548 = vunpack.c.l.b16 %v427
      %v549 = vunpack.c.h.b16 %v427
      %v550 = vunpack.c.l.b16 %v428
      %v551 = vunpack.c.l.b16 %v429
      %v552 = vunpack.c.h.b16 %v429
      %v553 = vunpack.c.l.b16 %v430
      %v554 = vunpack.c.l.b16 %v431
      %v555 = vunpack.c.h.b16 %v431
      %v556 = vunpack.c.l.b16 %v432
      %v557 = vunpack.c.l.b16 %v433
      %v558 = vunpack.c.h.b16 %v433
      %v559 = vunpack.c.l.b16 %v434
      %v560 = vunpack.c.l.b16 %v435
      %v561 = vunpack.c.h.b16 %v435
      %v562 = vunpack.c.l.b16 %v436
      %v563 = vpack.c.b16 %v512, %v509
      %v564 = vpack.c.b16 %v513, %v510
      %v565 = vpack.c.b16 %v514, %v511
      %v566 = vpack.c.b16 %v518, %v515
      %v567 = vpack.c.b16 %v519, %v516
      %v568 = vpack.c.b16 %v520, %v517
      %v569 = vpack.c.b16 %v524, %v521
      %v570 = vpack.c.b16 %v525, %v522
      %v571 = vpack.c.b16 %v526, %v523
      %v572 = vpack.c.b16 %v530, %v527
      %v573 = vpack.c.b16 %v531, %v528
      %v574 = vpack.c.b16 %v532, %v529
      %v575 = vpack.c.b16 %v536, %v533
      %v576 = vpack.c.b16 %v537, %v534
      %v577 = vpack.c.b16 %v538, %v535
      %v578 = vpack.c.b16 %v542, %v539
      %v579 = vpack.c.b16 %v543, %v540
      %v580 = vpack.c.b16 %v544, %v541
      %v581 = vpack.c.b16 %v548, %v545
      %v582 = vpack.c.b16 %v549, %v546
      %v583 = vpack.c.b16 %v550, %v547
      %v584 = vpack.c.b16 %v554, %v551
      %v585 = vpack.c.b16 %v555, %v552
      %v586 = vpack.c.b16 %v556, %v553
      %v587 = vpack.c.b16 %v560, %v557
      %v588 = vpack.c.b16 %v561, %v558
      %v589 = vpack.c.b16 %v562, %v559
      %vm617 = vcmask 130048
      %v619 = vsel %vm617, %v462, 0
      %v622 = vsel %vm617, %v464, 0
      %v625 = vsel %vm617, %v466, 0
      %v628 = vsel %vm617, %v468, 0
      %630 = vmatprep.subr.bf16.mxu0 %v564
      %631 = vmatpush1.bf16.msra.mxu0 %v563
      %632 = vmatprep.subr.bf16.mxu0 %v567
      %633 = vmatpush1.bf16.msra.mxu0 %v566
      %634 = vmatprep.subr.bf16.mxu0 %v570
      %635 = vmatpush1.bf16.msra.mxu0 %v569
      %636 = vmatprep.subr.bf16.mxu0 %v573
      %637 = vmatpush1.bf16.msra.mxu0 %v572
      %638 = vmatprep.subr.bf16.mxu0 %v576
      %639 = vmatpush1.bf16.msra.mxu0 %v575
      %640 = vmatprep.subr.bf16.mxu0 %v579
      %641 = vmatpush1.bf16.msra.mxu0 %v578
      %642 = vmatprep.subr.bf16.mxu0 %v582
      %643 = vmatpush1.bf16.msra.mxu0 %v581
      %644 = vmatprep.subr.bf16.mxu0 %v585
      %645 = vmatpush1.bf16.msra.mxu0 %v584
      %646 = vmatprep.subr.bf16.mxu0 %v588
      %647 = vmatpush1.bf16.msra.mxu0 %v587
      %648 = vmatprep.subr.bf16.mxu0 0
      %649 = vmatpush1.bf16.msra.mxu0 0
      %650 = vmatprep.subr.bf16.mxu0 0
      %651 = vmatpush1.bf16.msra.mxu0 0
      %652 = vmatprep.subr.bf16.mxu0 0
      %653 = vmatpush1.bf16.msra.mxu0 0
      %654 = vmatprep.subr.bf16.mxu0 0
      %655 = vmatpush1.bf16.msra.mxu0 0
      %656 = vmatprep.subr.bf16.mxu0 0
      %657 = vmatpush1.bf16.msra.mxu0 0
      %658 = vmatprep.subr.bf16.mxu0 0
      %659 = vmatpush1.bf16.msra.mxu0 0
      %660 = vmatprep.subr.bf16.mxu0 0
      %661 = vmatpush1.bf16.msra.mxu0 0
      %662 = vmatprep.mubr.bf16.mxu0 %v619
      %663 = vmatmul.mubr.bf16.gmra.mrb[0].mxu0 %v461
      %v664 = vpop.f32.mrb[0].mxu0
      %v665 = vadd.f32 0.0, %v664
      %v666 = vpop.f32.mrb[0].mxu0
      %v667 = vadd.f32 0.0, %v666
      %v668 = vpop.f32.mrb[0].mxu0
      %v669 = vadd.f32 0.0, %v668
      %v670 = vpop.f32.mrb[0].mxu0
      %v671 = vadd.f32 0.0, %v670
      %672 = vmatprep.mubr.bf16.mxu0 %v622
      %673 = vmatmul.mubr.bf16.gmra.mrb[0].mxu0 %v463
      %v674 = vpop.f32.mrb[0].mxu0
      %v675 = vadd.f32 0.0, %v674
      %v676 = vpop.f32.mrb[0].mxu0
      %v677 = vadd.f32 0.0, %v676
      %v678 = vpop.f32.mrb[0].mxu0
      %v679 = vadd.f32 0.0, %v678
      %v680 = vpop.f32.mrb[0].mxu0
      %v681 = vadd.f32 0.0, %v680
      %682 = vmatprep.mubr.bf16.mxu0 %v625
      %683 = vmatmul.mubr.bf16.gmra.mrb[0].mxu0 %v465
      %v684 = vpop.f32.mrb[0].mxu0
      %v685 = vadd.f32 0.0, %v684
      %v686 = vpop.f32.mrb[0].mxu0
      %v687 = vadd.f32 0.0, %v686
      %v688 = vpop.f32.mrb[0].mxu0
      %v689 = vadd.f32 0.0, %v688
      %v690 = vpop.f32.mrb[0].mxu0
      %v691 = vadd.f32 0.0, %v690
      %692 = vmatprep.mubr.bf16.mxu0 %v628
      %693 = vmatmul.mubr.bf16.gmra.mrb[0].mxu0 %v467
      %v694 = vpop.f32.mrb[0].mxu0
      %v695 = vadd.f32 0.0, %v694
      %v696 = vpop.f32.mrb[0].mxu0
      %v697 = vadd.f32 0.0, %v696
      %v698 = vpop.f32.mrb[0].mxu0
      %v699 = vadd.f32 0.0, %v698
      %v700 = vpop.f32.mrb[0].mxu0
      %v701 = vadd.f32 0.0, %v700
      %702 = vdwg.mxu0
      %703 = vmatprep.subr.bf16.mxu0 0
      %704 = vmatpush1.bf16.msra.mxu0 %v565
      %705 = vmatprep.subr.bf16.mxu0 0
      %706 = vmatpush1.bf16.msra.mxu0 %v568
      %707 = vmatprep.subr.bf16.mxu0 0
      %708 = vmatpush1.bf16.msra.mxu0 %v571
      %709 = vmatprep.subr.bf16.mxu0 0
      %710 = vmatpush1.bf16.msra.mxu0 %v574
      %711 = vmatprep.subr.bf16.mxu0 0
      %712 = vmatpush1.bf16.msra.mxu0 %v577
      %713 = vmatprep.subr.bf16.mxu0 0
      %714 = vmatpush1.bf16.msra.mxu0 %v580
      %715 = vmatprep.subr.bf16.mxu0 0
      %716 = vmatpush1.bf16.msra.mxu0 %v583
      %717 = vmatprep.subr.bf16.mxu0 0
      %718 = vmatpush1.bf16.msra.mxu0 %v586
      %719 = vmatprep.subr.bf16.mxu0 0
      %720 = vmatpush1.bf16.msra.mxu0 %v589
      %721 = vmatprep.subr.bf16.mxu0 0
      %722 = vmatpush1.bf16.msra.mxu0 0
      %723 = vmatprep.subr.bf16.mxu0 0
      %724 = vmatpush1.bf16.msra.mxu0 0
      %725 = vmatprep.subr.bf16.mxu0 0
      %726 = vmatpush1.bf16.msra.mxu0 0
      %727 = vmatprep.subr.bf16.mxu0 0
      %728 = vmatpush1.bf16.msra.mxu0 0
      %729 = vmatprep.subr.bf16.mxu0 0
      %730 = vmatpush1.bf16.msra.mxu0 0
      %731 = vmatprep.subr.bf16.mxu0 0
      %732 = vmatpush1.bf16.msra.mxu0 0
      %733 = vmatprep.subr.bf16.mxu0 0
      %734 = vmatpush1.bf16.msra.mxu0 0
      %735 = vmatprep.mubr.bf16.mxu0 %v619
      %736 = vmatmul.mubr.bf16.gmra.mrb[0].mxu0 %v461
      %v737 = vpop.f32.mrb[0].mxu0
      %v738 = vadd.f32 0.0, %v737
      %v739 = vpop.f32.mrb[0].mxu0
      %v740 = vpop.f32.mrb[0].mxu0
      %v741 = vadd.f32 0.0, %v740
      %v742 = vpop.f32.mrb[0].mxu0
      %743 = vmatprep.mubr.bf16.mxu0 %v622
      %744 = vmatmul.mubr.bf16.gmra.mrb[0].mxu0 %v463
      %v745 = vpop.f32.mrb[0].mxu0
      %v746 = vadd.f32 0.0, %v745
      %v747 = vpop.f32.mrb[0].mxu0
      %v748 = vpop.f32.mrb[0].mxu0
      %v749 = vadd.f32 0.0, %v748
      %v750 = vpop.f32.mrb[0].mxu0
      %751 = vmatprep.mubr.bf16.mxu0 %v625
      %752 = vmatmul.mubr.bf16.gmra.mrb[0].mxu0 %v465
      %v753 = vpop.f32.mrb[0].mxu0
      %v754 = vadd.f32 0.0, %v753
      %v755 = vpop.f32.mrb[0].mxu0
      %v756 = vpop.f32.mrb[0].mxu0
      %v757 = vadd.f32 0.0, %v756
      %v758 = vpop.f32.mrb[0].mxu0
      %759 = vmatprep.mubr.bf16.mxu0 %v628
      %760 = vmatmul.mubr.bf16.gmra.mrb[0].mxu0 %v467
      %v761 = vpop.f32.mrb[0].mxu0
      %v762 = vadd.f32 0.0, %v761
      %v763 = vpop.f32.mrb[0].mxu0
      %v764 = vpop.f32.mrb[0].mxu0
      %v765 = vadd.f32 0.0, %v764
      %v766 = vpop.f32.mrb[0].mxu0
      %767 = vdwg.mxu0
      %v768 = vld [vmem:[%s3] sm:$0xff]
      %v769 = vld [vmem:[%s3 + $0x8] sm:$0xff]
      %v770 = vld [vmem:[%s3 + $0x10] sm:$0xff]
      %v771 = vld [vmem:[%s3 + $0x18] sm:$0xff]
      %v772 = vld [vmem:[%s3 + $0x20] sm:$0xff]
      %v773 = vld [vmem:[%s3 + $0x28] sm:$0xff]
      %v774 = vld [vmem:[%s3 + $0x30] sm:$0xff]
      %v775 = vld [vmem:[%s3 + $0x38] sm:$0xff]
      %v776 = vld [vmem:[%s3 + $0x40] sm:$0xff]
      %v777 = vld [vmem:[%s3 + $0x48] sm:$0xff]
      %v778 = vld [vmem:[%s3 + $0x50] sm:$0xff]
      %v779 = vld [vmem:[%s3 + $0x58] sm:$0xff]
      %v780 = vld [vmem:[%s3 + $0x60] sm:$0xff]
      %v781 = vld [vmem:[%s3 + $0x68] sm:$0xff]
      %v782 = vld [vmem:[%s3 + $0x70] sm:$0xff]
      %v783 = vld [vmem:[%s3 + $0x78] sm:$0xff]
      %v784 = vld [vmem:[%s3 + $0x80] sm:$0xff]
      %v785 = vld [vmem:[%s3 + $0x88] sm:$0xff]
      %v786 = vld [vmem:[%s3 + $0x90] sm:$0xff]
      %v787 = vld [vmem:[%s3 + $0x98] sm:$0xff]
      %v788 = vld [vmem:[%s3 + $0xa0] sm:$0xff]
      %v789 = vld [vmem:[%s3 + $0xa8] sm:$0xff]
      %v790 = vld [vmem:[%s3 + $0xb0] sm:$0xff]
      %v791 = vld [vmem:[%s3 + $0xb8] sm:$0xff]
      %v792 = vadd.f32 %v665, %v768
      %v793 = vadd.f32 %v667, %v769
      %v794 = vadd.f32 %v738, %v770
      %v795 = vadd.f32 %v669, %v771
      %v796 = vadd.f32 %v671, %v772
      %v797 = vadd.f32 %v741, %v773
      %v798 = vadd.f32 %v675, %v774
      %v799 = vadd.f32 %v677, %v775
      %v800 = vadd.f32 %v746, %v776
      %v801 = vadd.f32 %v679, %v777
      %v802 = vadd.f32 %v681, %v778
      %v803 = vadd.f32 %v749, %v779
      %v804 = vadd.f32 %v685, %v780
      %v805 = vadd.f32 %v687, %v781
      %v806 = vadd.f32 %v754, %v782
      %v807 = vadd.f32 %v689, %v783
      %v808 = vadd.f32 %v691, %v784
      %v809 = vadd.f32 %v757, %v785
      %v810 = vadd.f32 %v695, %v786
      %v811 = vadd.f32 %v697, %v787
      %v812 = vadd.f32 %v762, %v788
      %v813 = vadd.f32 %v699, %v789
      %v814 = vadd.f32 %v701, %v790
      %v815 = vadd.f32 %v765, %v791
      %v816 = vmax.f32 %v792, 0.0
      %v817 = vmax.f32 %v793, 0.0
      %v818 = vmax.f32 %v794, 0.0
      %v819 = vmax.f32 %v795, 0.0
      %v820 = vmax.f32 %v796, 0.0
      %v821 = vmax.f32 %v797, 0.0
      %v822 = vmax.f32 %v798, 0.0
      %v823 = vmax.f32 %v799, 0.0
      %v824 = vmax.f32 %v800, 0.0
      %v825 = vmax.f32 %v801, 0.0
      %v826 = vmax.f32 %v802, 0.0
      %v827 = vmax.f32 %v803, 0.0
      %v828 = vmax.f32 %v804, 0.0
      %v829 = vmax.f32 %v805, 0.0
      %v830 = vmax.f32 %v806, 0.0
      %v831 = vmax.f32 %v807, 0.0
      %v832 = vmax.f32 %v808, 0.0
      %v833 = vmax.f32 %v809, 0.0
      %v834 = vmax.f32 %v810, 0.0
      %v835 = vmax.f32 %v811, 0.0
      %v836 = vmax.f32 %v812, 0.0
      %v837 = vmax.f32 %v813, 0.0
      %v838 = vmax.f32 %v814, 0.0
      %v839 = vmax.f32 %v815, 0.0
      %v840 = vpack.c.bf16 %v819, %v816
      %v841 = vpack.c.bf16 %v820, %v817
      %v842 = vpack.c.bf16 %v821, %v818
      %v843 = vpack.c.bf16 %v825, %v822
      %v844 = vpack.c.bf16 %v826, %v823
      %v845 = vpack.c.bf16 %v827, %v824
      %v846 = vpack.c.bf16 %v831, %v828
      %v847 = vpack.c.bf16 %v832, %v829
      %v848 = vpack.c.bf16 %v833, %v830
      %v849 = vpack.c.bf16 %v837, %v834
      %v850 = vpack.c.bf16 %v838, %v835
      %v851 = vpack.c.bf16 %v839, %v836
      %v852 = vld [vmem:[%s4] sm:$0xf]
      %v853 = vld [vmem:[%s4 + $0x4] sm:$0xf]
      %v854 = vld [vmem:[%s4 + $0x8] sm:$0xf]
      %v855 = vld [vmem:[%s4 + $0xc] sm:$0xf]
      %v856 = vld [vmem:[%s4 + $0x10] sm:$0xf]
      %v857 = vld [vmem:[%s4 + $0x14] sm:$0xf]
      %v858 = vld [vmem:[%s4 + $0x18] sm:$0xf]
      %v859 = vld [vmem:[%s4 + $0x1c] sm:$0xf]
      %v860 = vld [vmem:[%s4 + $0x20] sm:$0xf]
      %v861 = vld [vmem:[%s4 + $0x24] sm:$0xf]
      %v862 = vld [vmem:[%s4 + $0x28] sm:$0xf]
      %v863 = vld [vmem:[%s4 + $0x2c] sm:$0xf]
      %v864 = vld [vmem:[%s4 + $0x30] sm:$0xf]
      %v865 = vld [vmem:[%s4 + $0x34] sm:$0xf]
      %v866 = vld [vmem:[%s4 + $0x38] sm:$0xf]
      %v867 = vld [vmem:[%s4 + $0x3c] sm:$0xf]
      %v868 = vld [vmem:[%s4 + $0x40] sm:$0xf]
      %v869 = vld [vmem:[%s4 + $0x44] sm:$0xf]
      %v870 = vld [vmem:[%s4 + $0x48] sm:$0xf]
      %v871 = vld [vmem:[%s4 + $0x4c] sm:$0xf]
      %v872 = vld [vmem:[%s4 + $0x50] sm:$0xf]
      %v873 = vld [vmem:[%s4 + $0x54] sm:$0xf]
      %v874 = vld [vmem:[%s4 + $0x58] sm:$0xf]
      %v875 = vld [vmem:[%s4 + $0x5c] sm:$0xf]
      %v876 = vld [vmem:[%s4 + $0x60] sm:$0xf]
      %v877 = vld [vmem:[%s4 + $0x64] sm:$0xf]
      %v878 = vld [vmem:[%s4 + $0x68] sm:$0xf]
      %v879 = vld [vmem:[%s4 + $0x6c] sm:$0xf]
      %v880 = vld [vmem:[%s4 + $0x70] sm:$0xf]
      %v881 = vld [vmem:[%s4 + $0x74] sm:$0xf]
      %v882 = vld [vmem:[%s4 + $0x78] sm:$0xf]
      %v883 = vld [vmem:[%s4 + $0x7c] sm:$0xf]
      %v884 = vld [vmem:[%s4 + $0x80] sm:$0xf]
      %v885 = vld [vmem:[%s4 + $0x84] sm:$0xf]
      %v886 = vld [vmem:[%s4 + $0x88] sm:$0xf]
      %v887 = vld [vmem:[%s4 + $0x8c] sm:$0xf]
      %v888 = vlaneseq
      %v889 = vshrl.u32 %v888, 7
      %v890 = vsub.s32 0, %v889
      %v891 = vrot.slane %v389, %v890
      %v928 = vunpack.c.l.b16 %v852
      %v929 = vunpack.c.l.b16 %v853
      %v930 = vunpack.c.l.b16 %v854
      %v931 = vunpack.c.l.b16 %v855
      %v932 = vunpack.c.l.b16 %v856
      %v933 = vunpack.c.l.b16 %v857
      %v934 = vunpack.c.l.b16 %v858
      %v935 = vunpack.c.l.b16 %v859
      %v936 = vunpack.c.l.b16 %v860
      %v937 = vunpack.c.l.b16 %v861
      %v938 = vunpack.c.l.b16 %v862
      %v939 = vunpack.c.l.b16 %v863
      %v940 = vunpack.c.l.b16 %v864
      %v941 = vunpack.c.l.b16 %v865
      %v942 = vunpack.c.l.b16 %v866
      %v943 = vunpack.c.l.b16 %v867
      %v944 = vunpack.c.l.b16 %v868
      %v945 = vunpack.c.l.b16 %v869
      %v946 = vunpack.c.l.b16 %v870
      %v947 = vunpack.c.l.b16 %v871
      %v948 = vunpack.c.l.b16 %v872
      %v949 = vunpack.c.l.b16 %v873
      %v950 = vunpack.c.l.b16 %v874
      %v951 = vunpack.c.l.b16 %v875
      %v952 = vunpack.c.l.b16 %v876
      %v953 = vunpack.c.l.b16 %v877
      %v954 = vunpack.c.l.b16 %v878
      %v955 = vunpack.c.l.b16 %v879
      %v956 = vunpack.c.l.b16 %v880
      %v957 = vunpack.c.l.b16 %v881
      %v958 = vunpack.c.l.b16 %v882
      %v959 = vunpack.c.l.b16 %v883
      %v960 = vunpack.c.l.b16 %v884
      %v961 = vunpack.c.l.b16 %v885
      %v962 = vunpack.c.l.b16 %v886
      %v963 = vunpack.c.l.b16 %v887
      %v964 = vpack.c.b16 %v929, %v928
      %v965 = vpack.c.b16 %v931, %v930
      %v966 = vpack.c.b16 %v933, %v932
      %v967 = vpack.c.b16 %v935, %v934
      %v968 = vpack.c.b16 %v937, %v936
      %v969 = vpack.c.b16 %v939, %v938
      %v970 = vpack.c.b16 %v941, %v940
      %v971 = vpack.c.b16 %v943, %v942
      %v972 = vpack.c.b16 %v945, %v944
      %v973 = vpack.c.b16 %v947, %v946
      %v974 = vpack.c.b16 %v949, %v948
      %v975 = vpack.c.b16 %v951, %v950
      %v976 = vpack.c.b16 %v953, %v952
      %v977 = vpack.c.b16 %v955, %v954
      %v978 = vpack.c.b16 %v957, %v956
      %v979 = vpack.c.b16 %v959, %v958
      %v980 = vpack.c.b16 %v961, %v960
      %v981 = vpack.c.b16 %v963, %v962
      %vm1000 = vcmask 261120
      %v1002 = vsel %vm1000, %v842, 0
      %v1005 = vsel %vm1000, %v845, 0
      %v1008 = vsel %vm1000, %v848, 0
      %v1011 = vsel %vm1000, %v851, 0
      %1013 = vmatprep.subr.bf16.mxu0 0
      %1014 = vmatpush1.bf16.msra.mxu0 %v964
      %1015 = vmatprep.subr.bf16.mxu0 0
      %1016 = vmatpush1.bf16.msra.mxu0 %v965
      %1017 = vmatprep.subr.bf16.mxu0 0
      %1018 = vmatpush1.bf16.msra.mxu0 %v966
      %1019 = vmatprep.subr.bf16.mxu0 0
      %1020 = vmatpush1.bf16.msra.mxu0 %v967
      %1021 = vmatprep.subr.bf16.mxu0 0
      %1022 = vmatpush1.bf16.msra.mxu0 %v968
      %1023 = vmatprep.subr.bf16.mxu0 0
      %1024 = vmatpush1.bf16.msra.mxu0 %v969
      %1025 = vmatprep.subr.bf16.mxu0 0
      %1026 = vmatpush1.bf16.msra.mxu0 %v970
      %1027 = vmatprep.subr.bf16.mxu0 0
      %1028 = vmatpush1.bf16.msra.mxu0 %v971
      %1029 = vmatprep.subr.bf16.mxu0 0
      %1030 = vmatpush1.bf16.msra.mxu0 %v972
      %1031 = vmatprep.subr.bf16.mxu0 0
      %1032 = vmatpush1.bf16.msra.mxu0 %v973
      %1033 = vmatprep.subr.bf16.mxu0 0
      %1034 = vmatpush1.bf16.msra.mxu0 %v974
      %1035 = vmatprep.subr.bf16.mxu0 0
      %1036 = vmatpush1.bf16.msra.mxu0 %v975
      %1037 = vmatprep.subr.bf16.mxu0 0
      %1038 = vmatpush1.bf16.msra.mxu0 %v976
      %1039 = vmatprep.subr.bf16.mxu0 0
      %1040 = vmatpush1.bf16.msra.mxu0 %v977
      %1041 = vmatprep.subr.bf16.mxu0 0
      %1042 = vmatpush1.bf16.msra.mxu0 %v978
      %1043 = vmatprep.subr.bf16.mxu0 0
      %1044 = vmatpush1.bf16.msra.mxu0 %v979
      %1045 = vmatprep.mubr.bf16.mxu0 %v841
      %1046 = vmatmul.mubr.bf16.gmra.mrb[0].mxu0 %v840
      %v1047 = vpop.f32.mrb[0].mxu0
      %v1048 = vadd.f32 %v891, %v1047
      %v1049 = vpop.f32.mrb[0].mxu0
      %v1050 = vpop.f32.mrb[0].mxu0
      %v1051 = vadd.f32 %v891, %v1050
      %v1052 = vpop.f32.mrb[0].mxu0
      %1053 = vmatprep.mubr.bf16.mxu0 %v844
      %1054 = vmatmul.mubr.bf16.gmra.mrb[0].mxu0 %v843
      %v1055 = vpop.f32.mrb[0].mxu0
      %v1056 = vadd.f32 %v891, %v1055
      %v1057 = vpop.f32.mrb[0].mxu0
      %v1058 = vpop.f32.mrb[0].mxu0
      %v1059 = vadd.f32 %v891, %v1058
      %v1060 = vpop.f32.mrb[0].mxu0
      %1061 = vmatprep.mubr.bf16.mxu0 %v847
      %1062 = vmatmul.mubr.bf16.gmra.mrb[0].mxu0 %v846
      %v1063 = vpop.f32.mrb[0].mxu0
      %v1064 = vadd.f32 %v891, %v1063
      %v1065 = vpop.f32.mrb[0].mxu0
      %v1066 = vpop.f32.mrb[0].mxu0
      %v1067 = vadd.f32 %v891, %v1066
      %v1068 = vpop.f32.mrb[0].mxu0
      %1069 = vmatprep.mubr.bf16.mxu0 %v850
      %1070 = vmatmul.mubr.bf16.gmra.mrb[0].mxu0 %v849
      %v1071 = vpop.f32.mrb[0].mxu0
      %v1072 = vadd.f32 %v891, %v1071
      %v1073 = vpop.f32.mrb[0].mxu0
      %v1074 = vpop.f32.mrb[0].mxu0
      %v1075 = vadd.f32 %v891, %v1074
      %v1076 = vpop.f32.mrb[0].mxu0
      %1077 = vdwg.mxu0
      %1078 = vmatprep.subr.bf16.mxu0 0
      %1079 = vmatpush1.bf16.msra.mxu0 %v980
      %1080 = vmatprep.subr.bf16.mxu0 0
      %1081 = vmatpush1.bf16.msra.mxu0 %v981
      %1082 = vmatprep.subr.bf16.mxu0 0
      %1083 = vmatpush1.bf16.msra.mxu0 0
      %1084 = vmatprep.subr.bf16.mxu0 0
      %1085 = vmatpush1.bf16.msra.mxu0 0
      %1086 = vmatprep.subr.bf16.mxu0 0
      %1087 = vmatpush1.bf16.msra.mxu0 0
      %1088 = vmatprep.subr.bf16.mxu0 0
      %1089 = vmatpush1.bf16.msra.mxu0 0
      %1090 = vmatprep.subr.bf16.mxu0 0
      %1091 = vmatpush1.bf16.msra.mxu0 0
      %1092 = vmatprep.subr.bf16.mxu0 0
      %1093 = vmatpush1.bf16.msra.mxu0 0
      %1094 = vmatprep.subr.bf16.mxu0 0
      %1095 = vmatpush1.bf16.msra.mxu0 0
      %1096 = vmatprep.subr.bf16.mxu0 0
      %1097 = vmatpush1.bf16.msra.mxu0 0
      %1098 = vmatprep.subr.bf16.mxu0 0
      %1099 = vmatpush1.bf16.msra.mxu0 0
      %1100 = vmatprep.subr.bf16.mxu0 0
      %1101 = vmatpush1.bf16.msra.mxu0 0
      %1102 = vmatprep.subr.bf16.mxu0 0
      %1103 = vmatpush1.bf16.msra.mxu0 0
      %1104 = vmatprep.subr.bf16.mxu0 0
      %1105 = vmatpush1.bf16.msra.mxu0 0
      %1106 = vmatprep.subr.bf16.mxu0 0
      %1107 = vmatpush1.bf16.msra.mxu0 0
      %1108 = vmatprep.subr.bf16.mxu0 0
      %1109 = vmatpush1.bf16.msra.mxu0 0
      %1110 = vmatprep.mubr.bf16.mxu0 0
      %1111 = vmatmul.mubr.bf16.gmra.mrb[0].mxu0 %v1002
      %v1112 = vpop.f32.mrb[0].mxu0
      %v1113 = vadd.f32 %v1048, %v1112
      %v1114 = vpop.f32.mrb[0].mxu0
      %v1115 = vpop.f32.mrb[0].mxu0
      %v1116 = vadd.f32 %v1051, %v1115
      %v1117 = vpop.f32.mrb[0].mxu0
      %1118 = vmatprep.mubr.bf16.mxu0 0
      %1119 = vmatmul.mubr.bf16.gmra.mrb[0].mxu0 %v1005
      %v1120 = vpop.f32.mrb[0].mxu0
      %v1121 = vadd.f32 %v1056, %v1120
      %v1122 = vpop.f32.mrb[0].mxu0
      %v1123 = vpop.f32.mrb[0].mxu0
      %v1124 = vadd.f32 %v1059, %v1123
      %v1125 = vpop.f32.mrb[0].mxu0
      %1126 = vmatprep.mubr.bf16.mxu0 0
      %1127 = vmatmul.mubr.bf16.gmra.mrb[0].mxu0 %v1008
      %v1128 = vpop.f32.mrb[0].mxu0
      %v1129 = vadd.f32 %v1064, %v1128
      %v1130 = vpop.f32.mrb[0].mxu0
      %v1131 = vpop.f32.mrb[0].mxu0
      %v1132 = vadd.f32 %v1067, %v1131
      %v1133 = vpop.f32.mrb[0].mxu0
      %1134 = vmatprep.mubr.bf16.mxu0 0
      %1135 = vmatmul.mubr.bf16.gmra.mrb[0].mxu0 %v1011
      %v1136 = vpop.f32.mrb[0].mxu0
      %v1137 = vadd.f32 %v1072, %v1136
      %v1138 = vpop.f32.mrb[0].mxu0
      %v1139 = vpop.f32.mrb[0].mxu0
      %v1140 = vadd.f32 %v1075, %v1139
      %v1141 = vpop.f32.mrb[0].mxu0
      %1142 = vdwg.mxu0
      %v1143 = vmax.f32 %v1113, 0.0
      %v1144 = vmax.f32 %v1116, 0.0
      %v1145 = vmax.f32 %v1121, 0.0
      %v1146 = vmax.f32 %v1124, 0.0
      %v1147 = vmax.f32 %v1129, 0.0
      %v1148 = vmax.f32 %v1132, 0.0
      %v1149 = vmax.f32 %v1137, 0.0
      %v1150 = vmax.f32 %v1140, 0.0
      %v1151 = vsel %vm1000, %v1143, 0.0
      %v1152 = vsel %vm1000, %v1144, 0.0
      %v1153 = vadd.f32 %v1151, %v1152
      %v1154 = vsel %vm1000, %v1145, 0.0
      %v1155 = vadd.f32 %v1153, %v1154
      %v1156 = vsel %vm1000, %v1146, 0.0
      %v1157 = vadd.f32 %v1155, %v1156
      %v1158 = vsel %vm1000, %v1147, 0.0
      %v1159 = vadd.f32 %v1157, %v1158
      %v1160 = vsel %vm1000, %v1148, 0.0
      %v1161 = vadd.f32 %v1159, %v1160
      %v1162 = vsel %vm1000, %v1149, 0.0
      %v1163 = vadd.f32 %v1161, %v1162
      %v1164 = vsel %vm1000, %v1150, 0.0
      %v1165 = vadd.f32 %v1163, %v1164
      %v1166 = vrot.slane %v1165, 4
      %v1167 = vadd.f32 %v1165, %v1166
      %v1168 = vrot.slane %v1167, 2
      %v1169 = vadd.f32 %v1167, %v1168
      %v1170 = vrot.slane %v1169, 1
      %v1171 = vadd.f32 %v1169, %v1170
      %v1172 = vrcp.pop 64.0
      %v1173 = vmul.f32 %v1171, %v1172
      %v1174 = vpack.c.bf16 %v1173, %v1173
      %v1175 = vld [vmem:[%s5] sm:$0xf]
      %v1176 = vld [vmem:[%s5 + $0x4] sm:$0xf]
      %v1177 = vld [vmem:[%s5 + $0x8] sm:$0xf]
      %v1178 = vld [vmem:[%s5 + $0xc] sm:$0xf]
      %v1183 = vunpack.c.l.b16 %v1175
      %v1184 = vunpack.c.l.b16 %v1176
      %v1185 = vunpack.c.l.b16 %v1177
      %v1186 = vunpack.c.l.b16 %v1178
      %v1187 = vpack.c.b16 %v1184, %v1183
      %v1188 = vpack.c.b16 %v1186, %v1185
      %v1192 = vsel %vm1000, %v1174, 0
      %1194 = vmatprep.subr.bf16.mxu0 0
      %1195 = vmatpush1.bf16.msra.mxu0 %v1187
      %1196 = vmatprep.subr.bf16.mxu0 0
      %1197 = vmatpush1.bf16.msra.mxu0 %v1188
      %1198 = vmatprep.subr.bf16.mxu0 0
      %1199 = vmatpush1.bf16.msra.mxu0 0
      %1200 = vmatprep.subr.bf16.mxu0 0
      %1201 = vmatpush1.bf16.msra.mxu0 0
      %1202 = vmatprep.subr.bf16.mxu0 0
      %1203 = vmatpush1.bf16.msra.mxu0 0
      %1204 = vmatprep.subr.bf16.mxu0 0
      %1205 = vmatpush1.bf16.msra.mxu0 0
      %1206 = vmatprep.subr.bf16.mxu0 0
      %1207 = vmatpush1.bf16.msra.mxu0 0
      %1208 = vmatprep.subr.bf16.mxu0 0
      %1209 = vmatpush1.bf16.msra.mxu0 0
      %1210 = vmatprep.subr.bf16.mxu0 0
      %1211 = vmatpush1.bf16.msra.mxu0 0
      %1212 = vmatprep.subr.bf16.mxu0 0
      %1213 = vmatpush1.bf16.msra.mxu0 0
      %1214 = vmatprep.subr.bf16.mxu0 0
      %1215 = vmatpush1.bf16.msra.mxu0 0
      %1216 = vmatprep.subr.bf16.mxu0 0
      %1217 = vmatpush1.bf16.msra.mxu0 0
      %1218 = vmatprep.subr.bf16.mxu0 0
      %1219 = vmatpush1.bf16.msra.mxu0 0
      %1220 = vmatprep.subr.bf16.mxu0 0
      %1221 = vmatpush1.bf16.msra.mxu0 0
      %1222 = vmatprep.subr.bf16.mxu0 0
      %1223 = vmatpush1.bf16.msra.mxu0 0
      %1224 = vmatprep.subr.bf16.mxu0 0
      %1225 = vmatpush1.bf16.msra.mxu0 0
      %1226 = vmatprep.mubr.bf16.mxu0 0
      %1227 = vmatmul.mubr.bf16.gmra.mrb[0].mxu0 %v1192
      %v1228 = vpop.f32.mrb[0].mxu0
      %v1229 = vadd.f32 %v390, %v1228
      %v1230 = vpop.f32.mrb[0].mxu0
      %v1231 = vpop.f32.mrb[0].mxu0
      %v1232 = vpop.f32.mrb[0].mxu0
      %1233 = vdwg.mxu0
      %v1234 = vmax.f32 %v1229, 0.0
      %v1235 = vpack.c.bf16 %v1234, %v1234
      %v1236 = vld [vmem:[%s6] sm:$0xf]
      %vm1237 = vcmask 64512
      %v1239 = vsel %vm1237, %v1235, 0
      %vm1241 = vcmask 1043456
      %v1243 = vsel %vm1241, %v1236, 0
      %1245 = vmatprep.subr.bf16.mxu0 0
      %1246 = vmatpush1.bf16.msra.mxu0 %v1243
      %1247 = vmatprep.subr.bf16.mxu0 0
      %1248 = vmatpush1.bf16.msra.mxu0 0
      %1249 = vmatprep.subr.bf16.mxu0 0
      %1250 = vmatpush1.bf16.msra.mxu0 0
      %1251 = vmatprep.subr.bf16.mxu0 0
      %1252 = vmatpush1.bf16.msra.mxu0 0
      %1253 = vmatprep.subr.bf16.mxu0 0
      %1254 = vmatpush1.bf16.msra.mxu0 0
      %1255 = vmatprep.subr.bf16.mxu0 0
      %1256 = vmatpush1.bf16.msra.mxu0 0
      %1257 = vmatprep.subr.bf16.mxu0 0
      %1258 = vmatpush1.bf16.msra.mxu0 0
      %1259 = vmatprep.subr.bf16.mxu0 0
      %1260 = vmatpush1.bf16.msra.mxu0 0
      %1261 = vmatprep.subr.bf16.mxu0 0
      %1262 = vmatpush1.bf16.msra.mxu0 0
      %1263 = vmatprep.subr.bf16.mxu0 0
      %1264 = vmatpush1.bf16.msra.mxu0 0
      %1265 = vmatprep.subr.bf16.mxu0 0
      %1266 = vmatpush1.bf16.msra.mxu0 0
      %1267 = vmatprep.subr.bf16.mxu0 0
      %1268 = vmatpush1.bf16.msra.mxu0 0
      %1269 = vmatprep.subr.bf16.mxu0 0
      %1270 = vmatpush1.bf16.msra.mxu0 0
      %1271 = vmatprep.subr.bf16.mxu0 0
      %1272 = vmatpush1.bf16.msra.mxu0 0
      %1273 = vmatprep.subr.bf16.mxu0 0
      %1274 = vmatpush1.bf16.msra.mxu0 0
      %1275 = vmatprep.subr.bf16.mxu0 0
      %1276 = vmatpush1.bf16.msra.mxu0 0
      %1277 = vmatprep.mubr.bf16.mxu0 0
      %1278 = vmatmul.mubr.bf16.gmra.mrb[0].mxu0 %v1239
      %v1279 = vpop.f32.mrb[0].mxu0
      %v1280 = vadd.f32 %v391, %v1279
      %v1281 = vpop.f32.mrb[0].mxu0
      %v1282 = vpop.f32.mrb[0].mxu0
      %v1283 = vpop.f32.mrb[0].mxu0
      %1284 = vdwg.mxu0
      %v1285 = vsub.f32 0.0, %v1280
      %v1286 = vmul.f32 %v1285, 1.442695
      %v1287 = vpow.pop %v1286
      %v1288 = vadd.f32 %v1287, 1.0
      %v1289 = vrcp.pop %v1288
      %v1290 = vmul.f32 1.0, %v1289
      %v1291 = vlaneseq
      %v1292 = vshrl.u32 %v1291, 7
      %v1293 = vsub.s32 0, %v1292
      %v1294 = vrot.slane %v1290, %v1293
      %v1295 = vmul.f32 %v1143, %v1294
      %v1296 = vmul.f32 %v1144, %v1294
      %v1297 = vmul.f32 %v1145, %v1294
      %v1298 = vmul.f32 %v1146, %v1294
      %v1299 = vmul.f32 %v1147, %v1294
      %v1300 = vmul.f32 %v1148, %v1294
      %v1301 = vmul.f32 %v1149, %v1294
      %v1302 = vmul.f32 %v1150, %v1294
      %v1303 = vpack.c.bf16 %v1296, %v1295
      %v1304 = vpack.c.bf16 %v1298, %v1297
      %v1305 = vpack.c.bf16 %v1300, %v1299
      %v1306 = vpack.c.bf16 %v1302, %v1301
      %v1307 = vld [vmem:[%s7] sm:$0xf]
      %v1308 = vld [vmem:[%s7 + $0x4] sm:$0xf]
      %v1309 = vld [vmem:[%s7 + $0x8] sm:$0xf]
      %v1310 = vld [vmem:[%s7 + $0xc] sm:$0xf]
      %v1311 = vld [vmem:[%s380] sm:$0xf]
      %v1312 = vld [vmem:[%s380 + $0x4] sm:$0xf]
      %v1313 = vld [vmem:[%s380 + $0x8] sm:$0xf]
      %v1314 = vld [vmem:[%s380 + $0xc] sm:$0xf]
      %v1315 = vld [vmem:[%s380 + $0x10] sm:$0xf]
      %v1316 = vld [vmem:[%s380 + $0x14] sm:$0xf]
      %v1317 = vld [vmem:[%s380 + $0x18] sm:$0xf]
      %v1318 = vld [vmem:[%s380 + $0x1c] sm:$0xf]
      %v1319 = vld [vmem:[%s8] sm:$0xf]
      %v1320 = vld [vmem:[%s8 + $0x4] sm:$0xf]
      %v1329 = vunpack.c.l.b16 %v1311
      %v1330 = vunpack.c.l.b16 %v1312
      %v1331 = vunpack.c.l.b16 %v1313
      %v1332 = vunpack.c.l.b16 %v1314
      %v1333 = vunpack.c.l.b16 %v1315
      %v1334 = vunpack.c.l.b16 %v1316
      %v1335 = vunpack.c.l.b16 %v1317
      %v1336 = vunpack.c.l.b16 %v1318
      %v1337 = vpack.c.b16 %v1330, %v1329
      %v1338 = vpack.c.b16 %v1332, %v1331
      %v1339 = vpack.c.b16 %v1334, %v1333
      %v1340 = vpack.c.b16 %v1336, %v1335
      %v1343 = vunpack.c.l.b16 %v1319
      %v1344 = vunpack.c.l.b16 %v1320
      %v1345 = vpack.c.b16 %v1344, %v1343
      %v1348 = vsel %vm617, %v1337, 0
      %v1351 = vsel %vm617, %v1338, 0
      %v1354 = vsel %vm617, %v1339, 0
      %v1357 = vsel %vm617, %v1340, 0
      %1359 = vmatprep.subr.bf16.mxu0 0
      %1360 = vmatpush1.bf16.msra.mxu0 %v1345
      %1361 = vmatprep.subr.bf16.mxu0 0
      %1362 = vmatpush1.bf16.msra.mxu0 0
      %1363 = vmatprep.subr.bf16.mxu0 0
      %1364 = vmatpush1.bf16.msra.mxu0 0
      %1365 = vmatprep.subr.bf16.mxu0 0
      %1366 = vmatpush1.bf16.msra.mxu0 0
      %1367 = vmatprep.subr.bf16.mxu0 0
      %1368 = vmatpush1.bf16.msra.mxu0 0
      %1369 = vmatprep.subr.bf16.mxu0 0
      %1370 = vmatpush1.bf16.msra.mxu0 0
      %1371 = vmatprep.subr.bf16.mxu0 0
      %1372 = vmatpush1.bf16.msra.mxu0 0
      %1373 = vmatprep.subr.bf16.mxu0 0
      %1374 = vmatpush1.bf16.msra.mxu0 0
      %1375 = vmatprep.subr.bf16.mxu0 0
      %1376 = vmatpush1.bf16.msra.mxu0 0
      %1377 = vmatprep.subr.bf16.mxu0 0
      %1378 = vmatpush1.bf16.msra.mxu0 0
      %1379 = vmatprep.subr.bf16.mxu0 0
      %1380 = vmatpush1.bf16.msra.mxu0 0
      %1381 = vmatprep.subr.bf16.mxu0 0
      %1382 = vmatpush1.bf16.msra.mxu0 0
      %1383 = vmatprep.subr.bf16.mxu0 0
      %1384 = vmatpush1.bf16.msra.mxu0 0
      %1385 = vmatprep.subr.bf16.mxu0 0
      %1386 = vmatpush1.bf16.msra.mxu0 0
      %1387 = vmatprep.subr.bf16.mxu0 0
      %1388 = vmatpush1.bf16.msra.mxu0 0
      %1389 = vmatprep.subr.bf16.mxu0 0
      %1390 = vmatpush1.bf16.msra.mxu0 0
      %1391 = vmatprep.mubr.bf16.mxu0 0
      %1392 = vmatmul.mubr.bf16.gmra.mrb[0].mxu0 %v1348
      %v1393 = vpop.f32.mrb[0].mxu0
      %v1394 = vadd.f32 0.0, %v1393
      %v1395 = vpop.f32.mrb[0].mxu0
      %v1396 = vpop.f32.mrb[0].mxu0
      %v1397 = vadd.f32 0.0, %v1396
      %v1398 = vpop.f32.mrb[0].mxu0
      %1399 = vmatprep.mubr.bf16.mxu0 0
      %1400 = vmatmul.mubr.bf16.gmra.mrb[0].mxu0 %v1351
      %v1401 = vpop.f32.mrb[0].mxu0
      %v1402 = vadd.f32 0.0, %v1401
      %v1403 = vpop.f32.mrb[0].mxu0
      %v1404 = vpop.f32.mrb[0].mxu0
      %v1405 = vadd.f32 0.0, %v1404
      %v1406 = vpop.f32.mrb[0].mxu0
      %1407 = vmatprep.mubr.bf16.mxu0 0
      %1408 = vmatmul.mubr.bf16.gmra.mrb[0].mxu0 %v1354
      %v1409 = vpop.f32.mrb[0].mxu0
      %v1410 = vadd.f32 0.0, %v1409
      %v1411 = vpop.f32.mrb[0].mxu0
      %v1412 = vpop.f32.mrb[0].mxu0
      %v1413 = vadd.f32 0.0, %v1412
      %v1414 = vpop.f32.mrb[0].mxu0
      %1415 = vmatprep.mubr.bf16.mxu0 0
      %1416 = vmatmul.mubr.bf16.gmra.mrb[0].mxu0 %v1357
      %v1417 = vpop.f32.mrb[0].mxu0
      %v1418 = vadd.f32 0.0, %v1417
      %v1419 = vpop.f32.mrb[0].mxu0
      %v1420 = vpop.f32.mrb[0].mxu0
      %v1421 = vadd.f32 0.0, %v1420
      %v1422 = vpop.f32.mrb[0].mxu0
      %1423 = vdwg.mxu0
      %v1428 = vunpack.c.l.b16 %v1307
      %v1429 = vunpack.c.l.b16 %v1308
      %v1430 = vunpack.c.l.b16 %v1309
      %v1431 = vunpack.c.l.b16 %v1310
      %v1432 = vpack.c.b16 %v1429, %v1428
      %v1433 = vpack.c.b16 %v1431, %v1430
      %v1437 = vsel %vm1000, %v1303, 0
      %v1440 = vsel %vm1000, %v1304, 0
      %v1443 = vsel %vm1000, %v1305, 0
      %v1446 = vsel %vm1000, %v1306, 0
      %1448 = vmatprep.subr.bf16.mxu0 0
      %1449 = vmatpush1.bf16.msra.mxu0 %v1432
      %1450 = vmatprep.subr.bf16.mxu0 0
      %1451 = vmatpush1.bf16.msra.mxu0 %v1433
      %1452 = vmatprep.subr.bf16.mxu0 0
      %1453 = vmatpush1.bf16.msra.mxu0 0
      %1454 = vmatprep.subr.bf16.mxu0 0
      %1455 = vmatpush1.bf16.msra.mxu0 0
      %1456 = vmatprep.subr.bf16.mxu0 0
      %1457 = vmatpush1.bf16.msra.mxu0 0
      %1458 = vmatprep.subr.bf16.mxu0 0
      %1459 = vmatpush1.bf16.msra.mxu0 0
      %1460 = vmatprep.subr.bf16.mxu0 0
      %1461 = vmatpush1.bf16.msra.mxu0 0
      %1462 = vmatprep.subr.bf16.mxu0 0
      %1463 = vmatpush1.bf16.msra.mxu0 0
      %1464 = vmatprep.subr.bf16.mxu0 0
      %1465 = vmatpush1.bf16.msra.mxu0 0
      %1466 = vmatprep.subr.bf16.mxu0 0
      %1467 = vmatpush1.bf16.msra.mxu0 0
      %1468 = vmatprep.subr.bf16.mxu0 0
      %1469 = vmatpush1.bf16.msra.mxu0 0
      %1470 = vmatprep.subr.bf16.mxu0 0
      %1471 = vmatpush1.bf16.msra.mxu0 0
      %1472 = vmatprep.subr.bf16.mxu0 0
      %1473 = vmatpush1.bf16.msra.mxu0 0
      %1474 = vmatprep.subr.bf16.mxu0 0
      %1475 = vmatpush1.bf16.msra.mxu0 0
      %1476 = vmatprep.subr.bf16.mxu0 0
      %1477 = vmatpush1.bf16.msra.mxu0 0
      %1478 = vmatprep.subr.bf16.mxu0 0
      %1479 = vmatpush1.bf16.msra.mxu0 0
      %1480 = vmatprep.mubr.bf16.mxu0 0
      %1481 = vmatmul.mubr.bf16.gmra.mrb[0].mxu0 %v1437
      %v1482 = vpop.f32.mrb[0].mxu0
      %v1483 = vadd.f32 %v1394, %v1482
      %v1484 = vpop.f32.mrb[0].mxu0
      %v1485 = vpop.f32.mrb[0].mxu0
      %v1486 = vadd.f32 %v1397, %v1485
      %v1487 = vpop.f32.mrb[0].mxu0
      %1488 = vmatprep.mubr.bf16.mxu0 0
      %1489 = vmatmul.mubr.bf16.gmra.mrb[0].mxu0 %v1440
      %v1490 = vpop.f32.mrb[0].mxu0
      %v1491 = vadd.f32 %v1402, %v1490
      %v1492 = vpop.f32.mrb[0].mxu0
      %v1493 = vpop.f32.mrb[0].mxu0
      %v1494 = vadd.f32 %v1405, %v1493
      %v1495 = vpop.f32.mrb[0].mxu0
      %1496 = vmatprep.mubr.bf16.mxu0 0
      %1497 = vmatmul.mubr.bf16.gmra.mrb[0].mxu0 %v1443
      %v1498 = vpop.f32.mrb[0].mxu0
      %v1499 = vadd.f32 %v1410, %v1498
      %v1500 = vpop.f32.mrb[0].mxu0
      %v1501 = vpop.f32.mrb[0].mxu0
      %v1502 = vadd.f32 %v1413, %v1501
      %v1503 = vpop.f32.mrb[0].mxu0
      %1504 = vmatprep.mubr.bf16.mxu0 0
      %1505 = vmatmul.mubr.bf16.gmra.mrb[0].mxu0 %v1446
      %v1506 = vpop.f32.mrb[0].mxu0
      %v1507 = vadd.f32 %v1418, %v1506
      %v1508 = vpop.f32.mrb[0].mxu0
      %v1509 = vpop.f32.mrb[0].mxu0
      %v1510 = vadd.f32 %v1421, %v1509
      %v1511 = vpop.f32.mrb[0].mxu0
      %1512 = vdwg.mxu0
      %v1513 = vlaneseq
      %v1514 = vshrl.u32 %v1513, 7
      %v1515 = vsub.s32 0, %v1514
      %v1516 = vrot.slane %v392, %v1515
      %v1517 = vadd.f32 %v1483, %v1516
      %v1518 = vadd.f32 %v1486, %v1516
      %v1519 = vadd.f32 %v1491, %v1516
      %v1520 = vadd.f32 %v1494, %v1516
      %v1521 = vadd.f32 %v1499, %v1516
      %v1522 = vadd.f32 %v1502, %v1516
      %v1523 = vadd.f32 %v1507, %v1516
      %v1524 = vadd.f32 %v1510, %v1516
      %v1525 = vmax.f32 %v1517, 0.0
      %v1526 = vmax.f32 %v1518, 0.0
      %v1527 = vmax.f32 %v1519, 0.0
      %v1528 = vmax.f32 %v1520, 0.0
      %v1529 = vmax.f32 %v1521, 0.0
      %v1530 = vmax.f32 %v1522, 0.0
      %v1531 = vmax.f32 %v1523, 0.0
      %v1532 = vmax.f32 %v1524, 0.0
      %v1533 = vpack.c.bf16 %v1526, %v1525
      %v1534 = vpack.c.bf16 %v1528, %v1527
      %v1535 = vpack.c.bf16 %v1530, %v1529
      %v1536 = vpack.c.bf16 %v1532, %v1531
      %v1541 = vunpack.c.l.b16 %v1533
      %v1542 = vunpack.c.h.b16 %v1533
      %v1543 = vunpack.c.l.b16 %v1534
      %v1544 = vunpack.c.h.b16 %v1534
      %v1545 = vunpack.c.l.b16 %v1535
      %v1546 = vunpack.c.h.b16 %v1535
      %v1547 = vunpack.c.l.b16 %v1536
      %v1548 = vunpack.c.h.b16 %v1536
      %v1549 = vpack.c.b16 %v1541, %v1541
      %v1550 = vpack.c.b16 %v1542, %v1542
      %v1551 = vpack.c.b16 %v1543, %v1543
      %v1552 = vpack.c.b16 %v1544, %v1544
      %v1553 = vpack.c.b16 %v1545, %v1545
      %v1554 = vpack.c.b16 %v1546, %v1546
      %v1555 = vpack.c.b16 %v1547, %v1547
      %v1556 = vpack.c.b16 %v1548, %v1548
      %vm1565 = vcmask 257024
      %1566 = vst.msk [vmem:[%s386] sm:$0xf] %vm1565, %v1549
      %1567 = vst.msk [vmem:[%s386 + $0x4] sm:$0xf] %vm1565, %v1550
      %1568 = vst.msk [vmem:[%s386 + $0x8] sm:$0xf] %vm1565, %v1551
      %1569 = vst.msk [vmem:[%s386 + $0xc] sm:$0xf] %vm1565, %v1552
      %1570 = vst.msk [vmem:[%s386 + $0x10] sm:$0xf] %vm1565, %v1553
      %1571 = vst.msk [vmem:[%s386 + $0x14] sm:$0xf] %vm1565, %v1554
      %1572 = vst.msk [vmem:[%s386 + $0x18] sm:$0xf] %vm1565, %v1555
      %1573 = vst.msk [vmem:[%s386 + $0x1c] sm:$0xf] %vm1565, %v1556
      %s1574 = smul.u32 8, %s21
      %p1575 = scmp.lt.s32.totalorder %s1574, 15
      %s1576 = scalar_select %p1575, %s1574, 15
      %s1577 = smul.addr %s1576, 4
      %s1578 = scalar_lea.vmem %s10, %s1577
      // Predicated region
      $region61: #{_lambda_.1} parent=59 // pred_check
        %p1579 = pneg %p259
      $region62: #{_lambda_.1} parent=59 // pred_check_branch
        %1581 = sbr.rel (%p1579) target = $region64
      $region63: #{_lambda_.1} parent=59 // pred_region
        %s1582 = smul.u32 8, %s21
      $region64: #{_lambda_.1} parent=59 // pred_fallthru
        _
    $region60: #{_lambda_.1} parent=5 // pred_fallthru
      _
    %p1583 = scmp.le.s32.totalorder 2, %s16
    // Predicated region
    $region65: #{_lambda_.1} parent=5 // pred_check
      %p1584 = pneg %p1583
    $region66: #{_lambda_.1} parent=5 // pred_check_branch
      %1586 = sbr.rel (%p1584) target = $region68
    $region67: #{_lambda_.1} parent=5 // pred_region
      %s1587 = ssub.s32 %s16, 2
      // Predicated region
      $region69: #{_lambda_.1} parent=67 // pred_check
        %p1588 = pneg %p265
      $region70: #{_lambda_.1} parent=67 // pred_check_branch
        %1590 = sbr.rel (%p1588) target = $region72
      $region71: #{_lambda_.1} parent=67 // pred_region
        %s1591 = smul.u32 8, %s22
        %p1592 = scmp.lt.s32.totalorder %s1591, 15
        %s1593 = scalar_select %p1592, %s1591, 15
        %s1594 = smul.addr %s1593, 4
        %s1595 = scalar_lea.vmem %s10, %s1594
      $region72: #{_lambda_.1} parent=67 // pred_fallthru
        _
    $region68: #{_lambda_.1} parent=5 // pred_fallthru
      _
  $region6: #{_lambda_.1} parent=0 // loop_footer
    %s20 = sadd.s32 1, %s16
  $region7: #{_lambda_.1} parent=0 // loop_footer_branch
    %15 = sbr.rel target = $region3
  $region8: #{_lambda_.1} parent=0 // loop_exit
    _

</llo_original>
